<compile_context>
chip_gen: v7x
topology: tpu7x:2x2x1
jax: 0.10.0
libtpu: 0.0.40
codegen_flags: <defaults>
</compile_context>

<pallas_src>
import functools

import jax
import jax.numpy as jnp
import numpy as np
from jax import lax
from jax.experimental import pallas as pl
from jax.experimental.pallas import tpu as pltpu


# Corner enumeration shared by the XLA gather, the kernel and the reference.
_CORNERS = tuple((sx, sy, sz) for sx in (0, 1) for sy in (0, 1) for sz in (0, 1))


def _round_up(x, m):
    return (x + m - 1) // m * m


# ---------------------------------------------------------------------------
# Pallas kernel: in-kernel trilinear weights + corner reduction + SDF decoder
# ---------------------------------------------------------------------------
def _lotd_sdf_kernel(x_ref, cf_ref, p_ref, h_ref, sdf_ref, *,
                     level_n_feats, level_res, chunk_n):
    # x_ref  : (3, TN)   f32   block-local coords in [-1, 1]
    # cf_ref : (8*F, TN) bf16  corner features, level-major rows
    # p_ref  : (H, F+3)  f32   packed decoder params [w1^T | b1 | w2 | b2]
    # h_ref  : (F, TN)   bf16  encoding output (feature-major)
    # sdf_ref: (1, TN)   f32   sdf output (lane-dense row)
    f32 = jnp.float32
    F = int(sum(level_n_feats))
    TN = cf_ref.shape[-1]
    num_chunks = TN // chunk_n

    # Packed decoder params: tiny, loaded once per grid step.
    w1t = p_ref[:, 0:F]                    # (H, F)
    b1 = p_ref[:, F:F + 1]                 # (H, 1)
    w2 = p_ref[:, F + 1:F + 2]             # (H, 1)
    b2 = p_ref[0:1, F + 2:F + 3]           # (1, 1)

    def chunk_body(ci, carry):
        co = pl.multiple_of(ci * chunk_n, 128)
        xc = x_ref[:, pl.ds(co, chunk_n)]                     # (3, cs) f32

        parts = []
        row0 = 0
        for Fl, R in zip(level_n_feats, level_res):
            # Trilinear fractions for this level (identical formula to the
            # XLA-side corner-index computation; f32 throughout).
            u = (xc + 1.0) * (0.5 * (R - 1))
            i0 = jnp.clip(jnp.floor(u), 0.0, float(R - 2))
            fr = u - i0                                       # (3, cs)
            fx, fy, fz = fr[0:1, :], fr[1:2, :], fr[2:3, :]

            h_l = None
            for c, (sx, sy, sz) in enumerate(_CORNERS):
                w = ((fx if sx else 1.0 - fx) *
                     (fy if sy else 1.0 - fy) *
                     (fz if sz else 1.0 - fz))                # (1, cs)
                r = row0 + c * Fl
                feats = cf_ref[r:r + Fl, pl.ds(co, chunk_n)].astype(f32)
                t = feats * w
                h_l = t if h_l is None else h_l + t
            parts.append(h_l)                                 # (Fl, cs)
            row0 += 8 * Fl

        h_chunk = parts[0] if len(parts) == 1 else jnp.concatenate(parts, axis=0)

        # Encoding output: one aligned (F, cs) store per chunk.
        h_ref[:, pl.ds(co, chunk_n)] = h_chunk.astype(h_ref.dtype)

        # Decoder layer 1: single K=F MXU matmul per chunk (merged levels).
        z = jnp.maximum(jnp.dot(w1t, h_chunk, preferred_element_type=f32) + b1,
                        0.0)                                  # (H, cs)
        # Decoder layer 2 (DOUT=1): VPU multiply + sublane reduce (no MXU
        # matmul with a single output column).
        sdf = jnp.sum(z * w2, axis=0, keepdims=True) + b2     # (1, cs)
        sdf_ref[:, pl.ds(co, chunk_n)] = sdf.astype(sdf_ref.dtype)
        return carry

    lax.fori_loop(0, num_chunks, chunk_body, 0)


def lotd_forest_sdf_forward(block_x, cf_t, w1, b1, w2, b2, *, level_n_feats,
                            level_res, tile_n=8192, chunk_n=1024,
                            h_feature_major=False):
    """Forward pass of LoTDForestSDF (input_normalized=True).

    block_x: (N, 3) f32 block-local normalized coords in [-1, 1]^3.
    cf_t: (8*F, N) bf16 gathered corner features (level-major rows).
    w1: (F, H), b1: (H,), w2: (H, 1), b2: (1,) decoder params (f32).
    Returns {"sdf": (N,) f32, "h": (N, F) bf16}  (or (F, N) if h_feature_major,
    which avoids an extra XLA transpose for feature-major consumers).
    """
    level_n_feats = tuple(int(f) for f in level_n_feats)
    level_res = tuple(int(r) for r in level_res)
    F = int(sum(level_n_feats))
    CF, N = cf_t.shape
    assert CF == 8 * F, "cf_t must have 8*sum(level_n_feats) rows"
    assert block_x.shape == (N, 3)
    H = w1.shape[1]
    assert w1.shape[0] == F
    assert w2.shape[1] == 1, "only n_extra_feat_from_output=0 (1-ch decoder)"

    # Tile / chunk setup (all multiples of 128 lanes; tile multiple of chunk).
    chunk_n = _round_up(max(128, min(int(chunk_n), int(tile_n))), 128)
    tile_n = _round_up(max(chunk_n, min(int(tile_n), _round_up(N, chunk_n))),
                       chunk_n)
    Np = _round_up(N, tile_n)

    x_t = jnp.asarray(block_x, jnp.float32).T                 # (3, N) lane-dense
    if Np != N:
        pad = Np - N
        x_t = jnp.pad(x_t, ((0, 0), (0, pad)))
        cf_t = jnp.pad(cf_t, ((0, 0), (0, pad)))
    num_tiles = Np // tile_n

    # Pack decoder params into a single operand: [w1^T | b1 | w2 | b2].
    params = jnp.concatenate([
        jnp.asarray(w1, jnp.float32).T,                               # (H, F)
        jnp.asarray(b1, jnp.float32).reshape(H, 1),                   # (H, 1)
        jnp.asarray(w2, jnp.float32)[:, :1],                          # (H, 1)
        jnp.broadcast_to(jnp.asarray(b2, jnp.float32).reshape(1, 1), (H, 1)),
    ], axis=1)                                                        # (H, F+3)

    kernel = functools.partial(_lotd_sdf_kernel,
                               level_n_feats=level_n_feats,
                               level_res=level_res,
                               chunk_n=chunk_n)

    h_t, sdf = pl.pallas_call(
        kernel,
        out_shape=(
            jax.ShapeDtypeStruct((F, Np), cf_t.dtype),   # h (feature-major)
            jax.ShapeDtypeStruct((1, Np), jnp.float32),  # sdf (lane-dense row)
        ),
        grid=(num_tiles,),
        in_specs=[
            pl.BlockSpec((3, tile_n), lambda i: (0, i)),
            pl.BlockSpec((8 * F, tile_n), lambda i: (0, i)),
            pl.BlockSpec((H, F + 3), lambda i: (0, 0)),
        ],
        out_specs=(
            pl.BlockSpec((F, tile_n), lambda i: (0, i)),
            pl.BlockSpec((1, tile_n), lambda i: (0, i)),
        ),
        compiler_params=pltpu.CompilerParams(
            dimension_semantics=("parallel",),
            vmem_limit_bytes=32 * 1024 * 1024),
    )(x_t, cf_t, params)

    sdf = sdf[0, :N]
    h_t = h_t[:, :N]
    # The transpose back to the module's (N, F) layout is wrapper-side layout
    # plumbing; feature-major consumers can skip it with h_feature_major=True.
    h = h_t if h_feature_major else h_t.T
    return {"sdf": sdf, "h": h}


# ---------------------------------------------------------------------------
# Plain-JAX glue: multi-level per-block grid corner gather (data-dependent)
# ---------------------------------------------------------------------------
def build_corner_features(grids, block_x, block_inds, feat_dtype=jnp.bfloat16):
    """grids: list of (B, R, R, R, Fl); block_x in [-1,1]^3 (N,3); block_inds (N,).

    Returns cf_t (8*F_total, N), level-major rows:
      row = 8*sum(F_0..F_{l-1}) + corner*F_l + f
    """
    x = jnp.asarray(block_x, jnp.float32)
    binds = jnp.asarray(block_inds, jnp.int32)
    rows = []
    for grid in grids:
        R = grid.shape[1]
        gT = jnp.transpose(grid, (4, 0, 1, 2, 3)).astype(jnp.float32)  # (Fl,B,R,R,R)
        u = (x + 1.0) * 0.5 * (R - 1)
        i0 = jnp.clip(jnp.floor(u), 0, R - 2).astype(jnp.int32)        # (N, 3)
        i1 = i0 + 1
        for (sx, sy, sz) in _CORNERS:
            ix = i1[:, 0] if sx else i0[:, 0]
            iy = i1[:, 1] if sy else i0[:, 1]
            iz = i1[:, 2] if sz else i0[:, 2]
            rows.append(gT[:, binds, ix, iy, iz])                      # (Fl, N)
    return jnp.concatenate(rows, axis=0).astype(feat_dtype)            # (8F, N)


# ---------------------------------------------------------------------------
# Pure-JAX reference (mirrors the kernel math from the same bf16 cf_t + f32 x)
# ---------------------------------------------------------------------------
def reference_forward(block_x, cf_t, w1, b1, w2, b2, level_n_feats, level_res):
    x = jnp.asarray(block_x, jnp.float32)
    cf = cf_t.astype(jnp.float32)
    parts, row0 = [], 0
    for Fl, R in zip(level_n_feats, level_res):
        u = (x + 1.0) * 0.5 * (R - 1)
        i0 = jnp.clip(jnp.floor(u), 0, R - 2)
        fr = u - i0
        acc = 0.0
        for c, (sx, sy, sz) in enumerate(_CORNERS):
            wx = fr[:, 0] if sx else 1.0 - fr[:, 0]
            wy = fr[:, 1] if sy else 1.0 - fr[:, 1]
            wz = fr[:, 2] if sz else 1.0 - fr[:, 2]
            w = (wx * wy * wz)[None, :]
            acc = acc + cf[row0 + c * Fl: row0 + (c + 1) * Fl, :] * w
        parts.append(acc)
        row0 += 8 * Fl
    h_t = jnp.concatenate(parts, axis=0)                 # (F, N)
    h = h_t.T                                            # (N, F)
    z = jnp.maximum(h @ w1 + b1, 0.0)
    sdf = (z @ w2 + b2)[:, 0]
    return h, sdf


# ---------------------------------------------------------------------------
# Main
# ---------------------------------------------------------------------------
if __name__ == "__main__":
    key = jax.random.PRNGKey(0)

    # Synthetic config consistent with the module:
    #   LoTDForestEncoding(3, ...): B=4 forest blocks, 2 levels,
    #   resolutions (4, 8), level_n_feats = (4, 4) -> F = 8
    #   decoder: MLP F -> H=32 -> 1  (n_extra_feat_from_output = 0)
    N, B = 16384, 4
    level_res = (4, 8)
    level_feats = (4, 4)
    F = sum(level_feats)
    H = 32

    keys = jax.random.split(key, 8)
    grids = [
        0.1 * jax.random.normal(keys[i], (B, r, r, r, f), dtype=jnp.float32)
        for i, (r, f) in enumerate(zip(level_res, level_feats))
    ]
    w1 = jax.random.normal(keys[4], (F, H), jnp.float32) / np.sqrt(F)
    b1 = 0.01 * jax.random.normal(keys[5], (H,), jnp.float32)
    w2 = jax.random.normal(keys[6], (H, 1), jnp.float32) / np.sqrt(H)
    b2 = jnp.full((1,), 0.1, jnp.float32)

    # Inputs: block-local normalized coords in [-1, 1]^3 and block indices
    # (forward(..., input_normalized=True) path).
    x = jax.random.uniform(keys[7], (N, 3), jnp.float32, minval=-1.0, maxval=1.0)
    block_inds = jax.random.randint(jax.random.fold_in(key, 99), (N,), 0, B,
                                    dtype=jnp.int32)

    cf_t = build_corner_features(grids, x, block_inds)

    fwd = jax.jit(functools.partial(lotd_forest_sdf_forward,
                                    level_n_feats=level_feats,
                                    level_res=level_res,
                                    tile_n=8192, chunk_n=1024))
    ret = fwd(x, cf_t, w1, b1, w2, b2)
    jax.block_until_ready(ret)

    h_ref, sdf_ref = reference_forward(x, cf_t, w1, b1, w2, b2,
                                       level_feats, level_res)
    np.testing.assert_allclose(np.asarray(ret["h"].astype(jnp.float32)),
                               np.asarray(h_ref), rtol=2e-2, atol=2e-2)
    np.testing.assert_allclose(np.asarray(ret["sdf"]), np.asarray(sdf_ref),
                               rtol=2e-2, atol=2e-2)

    print("KERNEL_OK")
</pallas_src>

<mosaic_0001>
module attributes {stable_mosaic.version = 11 : i64} {
  func.func @_lotd_sdf_kernel(%arg0: i32, %arg1: memref<3x8192xf32, #tpu.memory_space<vmem>>, %arg2: memref<64x8192xbf16, #tpu.memory_space<vmem>>, %arg3: memref<32x11xf32, #tpu.memory_space<vmem>>, %arg4: memref<8x8192xbf16, #tpu.memory_space<vmem>>, %arg5: memref<1x8192xf32, #tpu.memory_space<vmem>>) attributes {dimension_semantics = [#tpu.dimension_semantics<parallel>], iteration_bounds = array<i64: 2>, scalar_prefetch = 0 : i64, scratch_operands = 0 : i64, tpu.core_type = #tpu.core_type<tc>, window_params = [{transform_indices = @transform_0, window_bounds = array<i64: 3, 8192>}, {transform_indices = @transform_1, window_bounds = array<i64: 64, 8192>}, {pipeline_mode = #tpu.pipeline_mode<synchronous>, transform_indices = @transform_2, window_bounds = array<i64: 32, 11>}, {transform_indices = @transform_3, window_bounds = array<i64: 8, 8192>}, {transform_indices = @transform_4, window_bounds = array<i64: 1, 8192>}]} {
    %c0 = arith.constant 0 : index
    %c0_0 = arith.constant 0 : index
    %0 = vector.load %arg3[%c0, %c0_0] : memref<32x11xf32, #tpu.memory_space<vmem>>, vector<32x8xf32>
    %c0_1 = arith.constant 0 : index
    %c8 = arith.constant 8 : index
    %1 = vector.load %arg3[%c0_1, %c8] : memref<32x11xf32, #tpu.memory_space<vmem>>, vector<32x1xf32>
    %c0_2 = arith.constant 0 : index
    %c9 = arith.constant 9 : index
    %2 = vector.load %arg3[%c0_2, %c9] : memref<32x11xf32, #tpu.memory_space<vmem>>, vector<32x1xf32>
    %c0_3 = arith.constant 0 : index
    %c10 = arith.constant 10 : index
    %3 = vector.load %arg3[%c0_3, %c10] : memref<32x11xf32, #tpu.memory_space<vmem>>, vector<1x1xf32>
    %c0_i32 = arith.constant 0 : i32
    %c8_i32 = arith.constant 8 : i32
    %4 = arith.addi %c0_i32, %c8_i32 : i32
    %c1_i32 = arith.constant 1 : i32
    scf.for %arg6 = %c0_i32 to %4 step %c1_i32  : i32 {
      %c1024_i32 = arith.constant 1024 : i32
      %5 = arith.muli %arg6, %c1024_i32 : i32
      %6 = tpu.assume_multiple %5, 128 : i32
      %c0_5 = arith.constant 0 : index
      %7 = arith.index_cast %6 : i32 to index
      %8 = vector.load %arg1[%c0_5, %7] : memref<3x8192xf32, #tpu.memory_space<vmem>>, vector<3x1024xf32>
      %cst = arith.constant 1.000000e+00 : f32
      %9 = vector.broadcast %cst : f32 to vector<3x1024xf32>
      %10 = arith.addf %8, %9 : vector<3x1024xf32>
      %cst_6 = arith.constant 1.500000e+00 : f32
      %11 = vector.broadcast %cst_6 : f32 to vector<3x1024xf32>
      %12 = arith.mulf %10, %11 : vector<3x1024xf32>
      %13 = math.floor %12 : vector<3x1024xf32>
      %cst_7 = arith.constant 0.000000e+00 : f32
      %cst_8 = arith.constant 2.000000e+00 : f32
      %14 = vector.broadcast %cst_7 : f32 to vector<3x1024xf32>
      %15 = arith.maximumf %14, %13 : vector<3x1024xf32>
      %16 = vector.broadcast %cst_8 : f32 to vector<3x1024xf32>
      %17 = arith.minimumf %16, %15 : vector<3x1024xf32>
      %18 = arith.subf %12, %17 : vector<3x1024xf32>
      %19 = vector.extract_strided_slice %18 {offsets = [0, 0], sizes = [1, 1024], strides = [1, 1]} : vector<3x1024xf32> to vector<1x1024xf32>
      %20 = vector.extract_strided_slice %18 {offsets = [1, 0], sizes = [1, 1024], strides = [1, 1]} : vector<3x1024xf32> to vector<1x1024xf32>
      %21 = vector.extract_strided_slice %18 {offsets = [2, 0], sizes = [1, 1024], strides = [1, 1]} : vector<3x1024xf32> to vector<1x1024xf32>
      %cst_9 = arith.constant 1.000000e+00 : f32
      %22 = vector.broadcast %cst_9 : f32 to vector<1x1024xf32>
      %23 = arith.subf %22, %19 : vector<1x1024xf32>
      %cst_10 = arith.constant 1.000000e+00 : f32
      %24 = vector.broadcast %cst_10 : f32 to vector<1x1024xf32>
      %25 = arith.subf %24, %20 : vector<1x1024xf32>
      %26 = arith.mulf %23, %25 : vector<1x1024xf32>
      %cst_11 = arith.constant 1.000000e+00 : f32
      %27 = vector.broadcast %cst_11 : f32 to vector<1x1024xf32>
      %28 = arith.subf %27, %21 : vector<1x1024xf32>
      %29 = arith.mulf %26, %28 : vector<1x1024xf32>
      %c0_12 = arith.constant 0 : index
      %30 = arith.index_cast %6 : i32 to index
      %31 = vector.load %arg2[%c0_12, %30] : memref<64x8192xbf16, #tpu.memory_space<vmem>>, vector<4x1024xbf16>
      %32 = arith.extf %31 : vector<4x1024xbf16> to vector<4x1024xf32>
      %33 = vector.broadcast %29 : vector<1x1024xf32> to vector<4x1024xf32>
      %34 = arith.mulf %32, %33 : vector<4x1024xf32>
      %cst_13 = arith.constant 1.000000e+00 : f32
      %35 = vector.broadcast %cst_13 : f32 to vector<1x1024xf32>
      %36 = arith.subf %35, %19 : vector<1x1024xf32>
      %cst_14 = arith.constant 1.000000e+00 : f32
      %37 = vector.broadcast %cst_14 : f32 to vector<1x1024xf32>
      %38 = arith.subf %37, %20 : vector<1x1024xf32>
      %39 = arith.mulf %36, %38 : vector<1x1024xf32>
      %40 = arith.mulf %39, %21 : vector<1x1024xf32>
      %c4 = arith.constant 4 : index
      %41 = arith.index_cast %6 : i32 to index
      %42 = vector.load %arg2[%c4, %41] : memref<64x8192xbf16, #tpu.memory_space<vmem>>, vector<4x1024xbf16>
      %43 = arith.extf %42 : vector<4x1024xbf16> to vector<4x1024xf32>
      %44 = vector.broadcast %40 : vector<1x1024xf32> to vector<4x1024xf32>
      %45 = arith.mulf %43, %44 : vector<4x1024xf32>
      %46 = arith.addf %34, %45 : vector<4x1024xf32>
      %cst_15 = arith.constant 1.000000e+00 : f32
      %47 = vector.broadcast %cst_15 : f32 to vector<1x1024xf32>
      %48 = arith.subf %47, %19 : vector<1x1024xf32>
      %49 = arith.mulf %48, %20 : vector<1x1024xf32>
      %cst_16 = arith.constant 1.000000e+00 : f32
      %50 = vector.broadcast %cst_16 : f32 to vector<1x1024xf32>
      %51 = arith.subf %50, %21 : vector<1x1024xf32>
      %52 = arith.mulf %49, %51 : vector<1x1024xf32>
      %c8_17 = arith.constant 8 : index
      %53 = arith.index_cast %6 : i32 to index
      %54 = vector.load %arg2[%c8_17, %53] : memref<64x8192xbf16, #tpu.memory_space<vmem>>, vector<4x1024xbf16>
      %55 = arith.extf %54 : vector<4x1024xbf16> to vector<4x1024xf32>
      %56 = vector.broadcast %52 : vector<1x1024xf32> to vector<4x1024xf32>
      %57 = arith.mulf %55, %56 : vector<4x1024xf32>
      %58 = arith.addf %46, %57 : vector<4x1024xf32>
      %cst_18 = arith.constant 1.000000e+00 : f32
      %59 = vector.broadcast %cst_18 : f32 to vector<1x1024xf32>
      %60 = arith.subf %59, %19 : vector<1x1024xf32>
      %61 = arith.mulf %60, %20 : vector<1x1024xf32>
      %62 = arith.mulf %61, %21 : vector<1x1024xf32>
      %c12 = arith.constant 12 : index
      %63 = arith.index_cast %6 : i32 to index
      %64 = vector.load %arg2[%c12, %63] : memref<64x8192xbf16, #tpu.memory_space<vmem>>, vector<4x1024xbf16>
      %65 = arith.extf %64 : vector<4x1024xbf16> to vector<4x1024xf32>
      %66 = vector.broadcast %62 : vector<1x1024xf32> to vector<4x1024xf32>
      %67 = arith.mulf %65, %66 : vector<4x1024xf32>
      %68 = arith.addf %58, %67 : vector<4x1024xf32>
      %cst_19 = arith.constant 1.000000e+00 : f32
      %69 = vector.broadcast %cst_19 : f32 to vector<1x1024xf32>
      %70 = arith.subf %69, %20 : vector<1x1024xf32>
      %71 = arith.mulf %19, %70 : vector<1x1024xf32>
      %cst_20 = arith.constant 1.000000e+00 : f32
      %72 = vector.broadcast %cst_20 : f32 to vector<1x1024xf32>
      %73 = arith.subf %72, %21 : vector<1x1024xf32>
      %74 = arith.mulf %71, %73 : vector<1x1024xf32>
      %c16 = arith.constant 16 : index
      %75 = arith.index_cast %6 : i32 to index
      %76 = vector.load %arg2[%c16, %75] : memref<64x8192xbf16, #tpu.memory_space<vmem>>, vector<4x1024xbf16>
      %77 = arith.extf %76 : vector<4x1024xbf16> to vector<4x1024xf32>
      %78 = vector.broadcast %74 : vector<1x1024xf32> to vector<4x1024xf32>
      %79 = arith.mulf %77, %78 : vector<4x1024xf32>
      %80 = arith.addf %68, %79 : vector<4x1024xf32>
      %cst_21 = arith.constant 1.000000e+00 : f32
      %81 = vector.broadcast %cst_21 : f32 to vector<1x1024xf32>
      %82 = arith.subf %81, %20 : vector<1x1024xf32>
      %83 = arith.mulf %19, %82 : vector<1x1024xf32>
      %84 = arith.mulf %83, %21 : vector<1x1024xf32>
      %c20 = arith.constant 20 : index
      %85 = arith.index_cast %6 : i32 to index
      %86 = vector.load %arg2[%c20, %85] : memref<64x8192xbf16, #tpu.memory_space<vmem>>, vector<4x1024xbf16>
      %87 = arith.extf %86 : vector<4x1024xbf16> to vector<4x1024xf32>
      %88 = vector.broadcast %84 : vector<1x1024xf32> to vector<4x1024xf32>
      %89 = arith.mulf %87, %88 : vector<4x1024xf32>
      %90 = arith.addf %80, %89 : vector<4x1024xf32>
      %91 = arith.mulf %19, %20 : vector<1x1024xf32>
      %cst_22 = arith.constant 1.000000e+00 : f32
      %92 = vector.broadcast %cst_22 : f32 to vector<1x1024xf32>
      %93 = arith.subf %92, %21 : vector<1x1024xf32>
      %94 = arith.mulf %91, %93 : vector<1x1024xf32>
      %c24 = arith.constant 24 : index
      %95 = arith.index_cast %6 : i32 to index
      %96 = vector.load %arg2[%c24, %95] : memref<64x8192xbf16, #tpu.memory_space<vmem>>, vector<4x1024xbf16>
      %97 = arith.extf %96 : vector<4x1024xbf16> to vector<4x1024xf32>
      %98 = vector.broadcast %94 : vector<1x1024xf32> to vector<4x1024xf32>
      %99 = arith.mulf %97, %98 : vector<4x1024xf32>
      %100 = arith.addf %90, %99 : vector<4x1024xf32>
      %101 = arith.mulf %19, %20 : vector<1x1024xf32>
      %102 = arith.mulf %101, %21 : vector<1x1024xf32>
      %c28 = arith.constant 28 : index
      %103 = arith.index_cast %6 : i32 to index
      %104 = vector.load %arg2[%c28, %103] : memref<64x8192xbf16, #tpu.memory_space<vmem>>, vector<4x1024xbf16>
      %105 = arith.extf %104 : vector<4x1024xbf16> to vector<4x1024xf32>
      %106 = vector.broadcast %102 : vector<1x1024xf32> to vector<4x1024xf32>
      %107 = arith.mulf %105, %106 : vector<4x1024xf32>
      %108 = arith.addf %100, %107 : vector<4x1024xf32>
      %cst_23 = arith.constant 1.000000e+00 : f32
      %109 = vector.broadcast %cst_23 : f32 to vector<3x1024xf32>
      %110 = arith.addf %8, %109 : vector<3x1024xf32>
      %cst_24 = arith.constant 3.500000e+00 : f32
      %111 = vector.broadcast %cst_24 : f32 to vector<3x1024xf32>
      %112 = arith.mulf %110, %111 : vector<3x1024xf32>
      %113 = math.floor %112 : vector<3x1024xf32>
      %cst_25 = arith.constant 0.000000e+00 : f32
      %cst_26 = arith.constant 6.000000e+00 : f32
      %114 = vector.broadcast %cst_25 : f32 to vector<3x1024xf32>
      %115 = arith.maximumf %114, %113 : vector<3x1024xf32>
      %116 = vector.broadcast %cst_26 : f32 to vector<3x1024xf32>
      %117 = arith.minimumf %116, %115 : vector<3x1024xf32>
      %118 = arith.subf %112, %117 : vector<3x1024xf32>
      %119 = vector.extract_strided_slice %118 {offsets = [0, 0], sizes = [1, 1024], strides = [1, 1]} : vector<3x1024xf32> to vector<1x1024xf32>
      %120 = vector.extract_strided_slice %118 {offsets = [1, 0], sizes = [1, 1024], strides = [1, 1]} : vector<3x1024xf32> to vector<1x1024xf32>
      %121 = vector.extract_strided_slice %118 {offsets = [2, 0], sizes = [1, 1024], strides = [1, 1]} : vector<3x1024xf32> to vector<1x1024xf32>
      %cst_27 = arith.constant 1.000000e+00 : f32
      %122 = vector.broadcast %cst_27 : f32 to vector<1x1024xf32>
      %123 = arith.subf %122, %119 : vector<1x1024xf32>
      %cst_28 = arith.constant 1.000000e+00 : f32
      %124 = vector.broadcast %cst_28 : f32 to vector<1x1024xf32>
      %125 = arith.subf %124, %120 : vector<1x1024xf32>
      %126 = arith.mulf %123, %125 : vector<1x1024xf32>
      %cst_29 = arith.constant 1.000000e+00 : f32
      %127 = vector.broadcast %cst_29 : f32 to vector<1x1024xf32>
      %128 = arith.subf %127, %121 : vector<1x1024xf32>
      %129 = arith.mulf %126, %128 : vector<1x1024xf32>
      %c32 = arith.constant 32 : index
      %130 = arith.index_cast %6 : i32 to index
      %131 = vector.load %arg2[%c32, %130] : memref<64x8192xbf16, #tpu.memory_space<vmem>>, vector<4x1024xbf16>
      %132 = arith.extf %131 : vector<4x1024xbf16> to vector<4x1024xf32>
      %133 = vector.broadcast %129 : vector<1x1024xf32> to vector<4x1024xf32>
      %134 = arith.mulf %132, %133 : vector<4x1024xf32>
      %cst_30 = arith.constant 1.000000e+00 : f32
      %135 = vector.broadcast %cst_30 : f32 to vector<1x1024xf32>
      %136 = arith.subf %135, %119 : vector<1x1024xf32>
      %cst_31 = arith.constant 1.000000e+00 : f32
      %137 = vector.broadcast %cst_31 : f32 to vector<1x1024xf32>
      %138 = arith.subf %137, %120 : vector<1x1024xf32>
      %139 = arith.mulf %136, %138 : vector<1x1024xf32>
      %140 = arith.mulf %139, %121 : vector<1x1024xf32>
      %c36 = arith.constant 36 : index
      %141 = arith.index_cast %6 : i32 to index
      %142 = vector.load %arg2[%c36, %141] : memref<64x8192xbf16, #tpu.memory_space<vmem>>, vector<4x1024xbf16>
      %143 = arith.extf %142 : vector<4x1024xbf16> to vector<4x1024xf32>
      %144 = vector.broadcast %140 : vector<1x1024xf32> to vector<4x1024xf32>
      %145 = arith.mulf %143, %144 : vector<4x1024xf32>
      %146 = arith.addf %134, %145 : vector<4x1024xf32>
      %cst_32 = arith.constant 1.000000e+00 : f32
      %147 = vector.broadcast %cst_32 : f32 to vector<1x1024xf32>
      %148 = arith.subf %147, %119 : vector<1x1024xf32>
      %149 = arith.mulf %148, %120 : vector<1x1024xf32>
      %cst_33 = arith.constant 1.000000e+00 : f32
      %150 = vector.broadcast %cst_33 : f32 to vector<1x1024xf32>
      %151 = arith.subf %150, %121 : vector<1x1024xf32>
      %152 = arith.mulf %149, %151 : vector<1x1024xf32>
      %c40 = arith.constant 40 : index
      %153 = arith.index_cast %6 : i32 to index
      %154 = vector.load %arg2[%c40, %153] : memref<64x8192xbf16, #tpu.memory_space<vmem>>, vector<4x1024xbf16>
      %155 = arith.extf %154 : vector<4x1024xbf16> to vector<4x1024xf32>
      %156 = vector.broadcast %152 : vector<1x1024xf32> to vector<4x1024xf32>
      %157 = arith.mulf %155, %156 : vector<4x1024xf32>
      %158 = arith.addf %146, %157 : vector<4x1024xf32>
      %cst_34 = arith.constant 1.000000e+00 : f32
      %159 = vector.broadcast %cst_34 : f32 to vector<1x1024xf32>
      %160 = arith.subf %159, %119 : vector<1x1024xf32>
      %161 = arith.mulf %160, %120 : vector<1x1024xf32>
      %162 = arith.mulf %161, %121 : vector<1x1024xf32>
      %c44 = arith.constant 44 : index
      %163 = arith.index_cast %6 : i32 to index
      %164 = vector.load %arg2[%c44, %163] : memref<64x8192xbf16, #tpu.memory_space<vmem>>, vector<4x1024xbf16>
      %165 = arith.extf %164 : vector<4x1024xbf16> to vector<4x1024xf32>
      %166 = vector.broadcast %162 : vector<1x1024xf32> to vector<4x1024xf32>
      %167 = arith.mulf %165, %166 : vector<4x1024xf32>
      %168 = arith.addf %158, %167 : vector<4x1024xf32>
      %cst_35 = arith.constant 1.000000e+00 : f32
      %169 = vector.broadcast %cst_35 : f32 to vector<1x1024xf32>
      %170 = arith.subf %169, %120 : vector<1x1024xf32>
      %171 = arith.mulf %119, %170 : vector<1x1024xf32>
      %cst_36 = arith.constant 1.000000e+00 : f32
      %172 = vector.broadcast %cst_36 : f32 to vector<1x1024xf32>
      %173 = arith.subf %172, %121 : vector<1x1024xf32>
      %174 = arith.mulf %171, %173 : vector<1x1024xf32>
      %c48 = arith.constant 48 : index
      %175 = arith.index_cast %6 : i32 to index
      %176 = vector.load %arg2[%c48, %175] : memref<64x8192xbf16, #tpu.memory_space<vmem>>, vector<4x1024xbf16>
      %177 = arith.extf %176 : vector<4x1024xbf16> to vector<4x1024xf32>
      %178 = vector.broadcast %174 : vector<1x1024xf32> to vector<4x1024xf32>
      %179 = arith.mulf %177, %178 : vector<4x1024xf32>
      %180 = arith.addf %168, %179 : vector<4x1024xf32>
      %cst_37 = arith.constant 1.000000e+00 : f32
      %181 = vector.broadcast %cst_37 : f32 to vector<1x1024xf32>
      %182 = arith.subf %181, %120 : vector<1x1024xf32>
      %183 = arith.mulf %119, %182 : vector<1x1024xf32>
      %184 = arith.mulf %183, %121 : vector<1x1024xf32>
      %c52 = arith.constant 52 : index
      %185 = arith.index_cast %6 : i32 to index
      %186 = vector.load %arg2[%c52, %185] : memref<64x8192xbf16, #tpu.memory_space<vmem>>, vector<4x1024xbf16>
      %187 = arith.extf %186 : vector<4x1024xbf16> to vector<4x1024xf32>
      %188 = vector.broadcast %184 : vector<1x1024xf32> to vector<4x1024xf32>
      %189 = arith.mulf %187, %188 : vector<4x1024xf32>
      %190 = arith.addf %180, %189 : vector<4x1024xf32>
      %191 = arith.mulf %119, %120 : vector<1x1024xf32>
      %cst_38 = arith.constant 1.000000e+00 : f32
      %192 = vector.broadcast %cst_38 : f32 to vector<1x1024xf32>
      %193 = arith.subf %192, %121 : vector<1x1024xf32>
      %194 = arith.mulf %191, %193 : vector<1x1024xf32>
      %c56 = arith.constant 56 : index
      %195 = arith.index_cast %6 : i32 to index
      %196 = vector.load %arg2[%c56, %195] : memref<64x8192xbf16, #tpu.memory_space<vmem>>, vector<4x1024xbf16>
      %197 = arith.extf %196 : vector<4x1024xbf16> to vector<4x1024xf32>
      %198 = vector.broadcast %194 : vector<1x1024xf32> to vector<4x1024xf32>
      %199 = arith.mulf %197, %198 : vector<4x1024xf32>
      %200 = arith.addf %190, %199 : vector<4x1024xf32>
      %201 = arith.mulf %119, %120 : vector<1x1024xf32>
      %202 = arith.mulf %201, %121 : vector<1x1024xf32>
      %c60 = arith.constant 60 : index
      %203 = arith.index_cast %6 : i32 to index
      %204 = vector.load %arg2[%c60, %203] : memref<64x8192xbf16, #tpu.memory_space<vmem>>, vector<4x1024xbf16>
      %205 = arith.extf %204 : vector<4x1024xbf16> to vector<4x1024xf32>
      %206 = vector.broadcast %202 : vector<1x1024xf32> to vector<4x1024xf32>
      %207 = arith.mulf %205, %206 : vector<4x1024xf32>
      %208 = arith.addf %200, %207 : vector<4x1024xf32>
      %209 = tpu.concatenate %108, %208 in 0 : vector<4x1024xf32>, vector<4x1024xf32> -> vector<8x1024xf32>
      %210 = arith.truncf %209 : vector<8x1024xf32> to vector<8x1024xbf16>
      %c0_39 = arith.constant 0 : index
      %211 = arith.index_cast %6 : i32 to index
      %212 = vector.load %arg4[%c0_39, %211] : memref<8x8192xbf16, #tpu.memory_space<vmem>>, vector<8x1024xbf16>
      tpu.vector_store %arg4[%c0_39, %211], %210 {strides = array<i32>} : memref<8x8192xbf16, #tpu.memory_space<vmem>>, vector<8x1024xbf16>,
      %cst_40 = arith.constant dense<0.000000e+00> : vector<32x1024xf32>
      %213 = tpu.matmul %0, %209, %cst_40 {dimension_numbers = #tpu.dot_dimension_numbers<[1], [0], [0], [1], [0, 0, 1, 1], [], []>} : vector<32x8xf32>, vector<8x1024xf32>, vector<32x1024xf32> -> vector<32x1024xf32>
      %214 = vector.broadcast %1 : vector<32x1xf32> to vector<32x1024xf32>
      %215 = arith.addf %213, %214 : vector<32x1024xf32>
      %cst_41 = arith.constant 0.000000e+00 : f32
      %216 = vector.broadcast %cst_41 : f32 to vector<32x1024xf32>
      %217 = arith.maximumf %215, %216 : vector<32x1024xf32>
      %218 = vector.broadcast %2 : vector<32x1xf32> to vector<32x1024xf32>
      %219 = arith.mulf %217, %218 : vector<32x1024xf32>
      %cst_42 = arith.constant dense<0.000000e+00> : vector<1024xf32>
      %220 = vector.multi_reduction <add>, %219, %cst_42 [0] : vector<32x1024xf32> to vector<1024xf32>
      %221 = vector.shape_cast %220 : vector<1024xf32> to vector<1x1024xf32>
      %222 = vector.broadcast %3 : vector<1x1xf32> to vector<1x1024xf32>
      %223 = arith.addf %221, %222 : vector<1x1024xf32>
      %c0_43 = arith.constant 0 : index
      %224 = arith.index_cast %6 : i32 to index
      %225 = vector.load %arg5[%c0_43, %224] : memref<1x8192xf32, #tpu.memory_space<vmem>>, vector<1x1024xf32>
      tpu.vector_store %arg5[%c0_43, %224], %223 {strides = array<i32>} : memref<1x8192xf32, #tpu.memory_space<vmem>>, vector<1x1024xf32>,
    }
    %c8_i32_4 = arith.constant 8 : i32
    return
  }
  func.func @transform_0(%arg0: i32) -> (i32, i32) {
    %c0_i32 = arith.constant 0 : i32
    %c0_i32_0 = arith.constant 0 : i32
    return %c0_i32, %arg0 : i32, i32
  }
  func.func @transform_1(%arg0: i32) -> (i32, i32) {
    %c0_i32 = arith.constant 0 : i32
    %c0_i32_0 = arith.constant 0 : i32
    return %c0_i32, %arg0 : i32, i32
  }
  func.func @transform_2(%arg0: i32) -> (i32, i32) {
    %c0_i32 = arith.constant 0 : i32
    %c0_i32_0 = arith.constant 0 : i32
    %c0_i32_1 = arith.constant 0 : i32
    return %c0_i32, %c0_i32_0 : i32, i32
  }
  func.func @transform_3(%arg0: i32) -> (i32, i32) {
    %c0_i32 = arith.constant 0 : i32
    %c0_i32_0 = arith.constant 0 : i32
    return %c0_i32, %arg0 : i32, i32
  }
  func.func @transform_4(%arg0: i32) -> (i32, i32) {
    %c0_i32 = arith.constant 0 : i32
    %c0_i32_0 = arith.constant 0 : i32
    return %c0_i32, %arg0 : i32, i32
  }
}

</mosaic_0001>

<llo_original>
// kernel: lotd_forest_sdf_forward.1
$region0: #{lotd_forest_sdf_forward.1}
  #allocation0 [shape = 'u32[]', space=smem, size = 0x4, offset = 0x4, fixed_abs, tag = 'smem constant byte address 0x4 - core index']
  #allocation1 [shape = 'u32[144,128]{1,0:T(1,128)}', space=vmem, size = 0x12000, scoped, tag = 'internal scratch']
  %s0 = inlined_call_operand.hbm [shape: f32[3,16384], index: 0, kind: input, shape index: {}]
  %s1 = inlined_call_operand.hbm [shape: bf16[64,16384], index: 1, kind: input, shape index: {}]
  %s2 = inlined_call_operand.vmem [shape: f32[32,11], index: 2, kind: input, shape index: {}]
  %s3 = inlined_call_operand.hbm [shape: bf16[8,16384], index: 3, kind: output, shape index: {0}]
  %s4 = inlined_call_operand.hbm [shape: f32[1,16384], index: 4, kind: output, shape index: {1}]
  %5 = xla_tuple %s3, %s4
  %s6 = sld [smem:[#allocation0]]
  $region68: #{lotd_forest_sdf_forward.1} parent=0
    _
  %s8 = ssub.s32 1, %s6
  %s9 = scalar_select 0, %s8, %s6
  $region1: #{lotd_forest_sdf_forward.1} parent=0
    #allocation2 [shape = 'u8[262144]{0}', space=vmem, size = 0x40000, scoped, tag = 'input window, operand 0']
    #allocation3 [shape = 's32[2]{0}', space=sflag, size = 0x8, scoped, tag = 'scoped memory for lotd_forest_sdf_forward.1']
    #allocation4 [shape = 's32[2]{0}', space=sflag, size = 0x8, scoped, tag = 'scoped memory for lotd_forest_sdf_forward.1']
    #allocation5 [shape = 'u8[2097152]{0}', space=vmem, size = 0x200000, scoped, tag = 'input window, operand 1']
    #allocation6 [shape = 's32[2]{0}', space=sflag, size = 0x8, scoped, tag = 'scoped memory for lotd_forest_sdf_forward.1']
    #allocation7 [shape = 'u8[262144]{0}', space=vmem, size = 0x40000, scoped, tag = 'output window, operand 0']
    #allocation8 [shape = 'u8[65536]{0}', space=vmem, size = 0x10000, scoped, tag = 'output window, operand 1']
    #allocation9 [shape = 's32[2]{0}', space=sflag, size = 0x8, scoped, tag = 'scoped memory for lotd_forest_sdf_forward.1']
    %10 = vsyncpa [#allocation3], 0
    %s11 = scalar_lea.sflag [#allocation3], 1
    %12 = vsyncpa %s11, 0
    %13 = vsyncpa [#allocation6], 0
    %s14 = scalar_lea.sflag [#allocation6], 1
    %15 = vsyncpa %s14, 0
    %16 = vsyncpa [#allocation4], 0
    %s17 = scalar_lea.sflag [#allocation4], 1
    %18 = vsyncpa %s17, 0
    %19 = vsyncpa [#allocation9], 0
    %s20 = scalar_lea.sflag [#allocation9], 1
    %21 = vsyncpa %s20, 0
    loop: start=0, step=1, limit=4
    $region2: #{lotd_forest_sdf_forward.1} parent=1 // loop_pre_header
      _
    $region3: #{lotd_forest_sdf_forward.1} parent=1 // loop_header
      %s23 = sphi 0, %s27
      %p24 = scmp.ge.s32.totalorder %s23, 4
      %s33 = sphi 0, %s35
      %s36 = sphi 0, %s33
      %s37 = sphi 0, %s36
      %s53 = sphi 0, %s37
      %s59 = sphi 0, %s61
      %s62 = sphi 0, %s59
      %s63 = sphi 0, %s62
      %s79 = sphi 0, %s63
      %s83 = sphi 0, %s83
      %s85 = sphi 0, %s83
      %s86 = sphi 0, %s85
      %s100 = sphi 0, %s86
      %s106 = sphi 0, %s108
      %s109 = sphi 0, %s106
      %s110 = sphi 0, %s109
      %s126 = sphi 0, %s110
      %s132 = sphi 0, %s134
      %s135 = sphi 0, %s132
      %s136 = sphi 0, %s135
      %s152 = sphi 0, %s136
    $region4: #{lotd_forest_sdf_forward.1} parent=1 // loop_header_branch
      %26 = sbr.rel (%p24) target = $region8
    $region5: #{lotd_forest_sdf_forward.1} parent=1 // loop_body
      %s28 = ssub.s32 %s23, 1
      %s29 = ssub.s32 %s23, 2
      %s30 = sadd.s32 %s23, 1
      %s31 = ssub.s32 %s23, %s30
      %p32 = scmp.eq.s32.totalorder %s31, 0
      %s34 = sadd.s32 %s33, 1
      %s35 = scalar_select %p32, %s33, %s34
      %p38 = pneg %p32
      %p39 = scmp.eq.s32.totalorder %s23, 1
      %p40 = por %p38, %p39
      %p41 = scmp.ne.s32.totalorder %s33, %s36
      %p42 = scmp.eq.s32.totalorder %s23, 0
      %p43 = por %p41, %p42
      %p44 = scmp.ne.s32.totalorder %s33, %s36
      %p45 = scmp.eq.s32.totalorder %s28, 1
      %p46 = por %p44, %p45
      %p47 = scmp.ne.s32.totalorder %s36, %s37
      %p48 = scmp.eq.s32.totalorder %s28, 0
      %p49 = por %p47, %p48
      %p50 = scmp.ne.s32.totalorder %s36, %s37
      %p51 = scmp.eq.s32.totalorder %s29, 1
      %p52 = por %p50, %p51
      %p54 = scmp.ne.s32.totalorder %s37, %s53
      %p55 = scmp.eq.s32.totalorder %s29, 0
      %p56 = por %p54, %p55
      %s57 = ssub.s32 %s23, %s30
      %p58 = scmp.eq.s32.totalorder %s57, 0
      %s60 = sadd.s32 %s59, 1
      %s61 = scalar_select %p58, %s59, %s60
      %p64 = pneg %p58
      %p65 = scmp.eq.s32.totalorder %s23, 1
      %p66 = por %p64, %p65
      %p67 = scmp.ne.s32.totalorder %s59, %s62
      %p68 = scmp.eq.s32.totalorder %s23, 0
      %p69 = por %p67, %p68
      %p70 = scmp.ne.s32.totalorder %s59, %s62
      %p71 = scmp.eq.s32.totalorder %s28, 1
      %p72 = por %p70, %p71
      %p73 = scmp.ne.s32.totalorder %s62, %s63
      %p74 = scmp.eq.s32.totalorder %s28, 0
      %p75 = por %p73, %p74
      %p76 = scmp.ne.s32.totalorder %s62, %s63
      %p77 = scmp.eq.s32.totalorder %s29, 1
      %p78 = por %p76, %p77
      %p80 = scmp.ne.s32.totalorder %s63, %s79
      %p81 = scmp.eq.s32.totalorder %s29, 0
      %p82 = por %p80, %p81
      %s84 = sadd.s32 %s83, 1
      %p87 = scmp.eq.s32.totalorder %s23, 1
      %p88 = scmp.ne.s32.totalorder %s83, %s85
      %p89 = scmp.eq.s32.totalorder %s23, 0
      %p90 = por %p88, %p89
      %p91 = scmp.ne.s32.totalorder %s83, %s85
      %p92 = scmp.eq.s32.totalorder %s28, 1
      %p93 = por %p91, %p92
      %p94 = scmp.ne.s32.totalorder %s85, %s86
      %p95 = scmp.eq.s32.totalorder %s28, 0
      %p96 = por %p94, %p95
      %p97 = scmp.ne.s32.totalorder %s85, %s86
      %p98 = scmp.eq.s32.totalorder %s29, 1
      %p99 = por %p97, %p98
      %p101 = scmp.ne.s32.totalorder %s86, %s100
      %p102 = scmp.eq.s32.totalorder %s29, 0
      %p103 = por %p101, %p102
      %s104 = ssub.s32 %s23, %s30
      %p105 = scmp.eq.s32.totalorder %s104, 0
      %s107 = sadd.s32 %s106, 1
      %s108 = scalar_select %p105, %s106, %s107
      %p111 = pneg %p105
      %p112 = scmp.eq.s32.totalorder %s23, 1
      %p113 = por %p111, %p112
      %p114 = scmp.ne.s32.totalorder %s106, %s109
      %p115 = scmp.eq.s32.totalorder %s23, 0
      %p116 = por %p114, %p115
      %p117 = scmp.ne.s32.totalorder %s106, %s109
      %p118 = scmp.eq.s32.totalorder %s28, 1
      %p119 = por %p117, %p118
      %p120 = scmp.ne.s32.totalorder %s109, %s110
      %p121 = scmp.eq.s32.totalorder %s28, 0
      %p122 = por %p120, %p121
      %p123 = scmp.ne.s32.totalorder %s109, %s110
      %p124 = scmp.eq.s32.totalorder %s29, 1
      %p125 = por %p123, %p124
      %p127 = scmp.ne.s32.totalorder %s110, %s126
      %p128 = scmp.eq.s32.totalorder %s29, 0
      %p129 = por %p127, %p128
      %s130 = ssub.s32 %s23, %s30
      %p131 = scmp.eq.s32.totalorder %s130, 0
      %s133 = sadd.s32 %s132, 1
      %s134 = scalar_select %p131, %s132, %s133
      %p137 = pneg %p131
      %p138 = scmp.eq.s32.totalorder %s23, 1
      %p139 = por %p137, %p138
      %p140 = scmp.ne.s32.totalorder %s132, %s135
      %p141 = scmp.eq.s32.totalorder %s23, 0
      %p142 = por %p140, %p141
      %p143 = scmp.ne.s32.totalorder %s132, %s135
      %p144 = scmp.eq.s32.totalorder %s28, 1
      %p145 = por %p143, %p144
      %p146 = scmp.ne.s32.totalorder %s135, %s136
      %p147 = scmp.eq.s32.totalorder %s28, 0
      %p148 = por %p146, %p147
      %p149 = scmp.ne.s32.totalorder %s135, %s136
      %p150 = scmp.eq.s32.totalorder %s29, 1
      %p151 = por %p149, %p150
      %p153 = scmp.ne.s32.totalorder %s136, %s152
      %p154 = scmp.eq.s32.totalorder %s29, 0
      %p155 = por %p153, %p154
      %p156 = scmp.le.s32.totalorder 1, %s23
      %p157 = scmp.lt.s32.totalorder %s23, 3
      %p158 = pnand %p156, %p157
      %p159 = pneg %p158
      // Predicated region
      $region9: #{lotd_forest_sdf_forward.1} parent=5 // pred_check
        _
      $region10: #{lotd_forest_sdf_forward.1} parent=5 // pred_check_branch
        %161 = sbr.rel (%p158) target = $region12
      $region11: #{lotd_forest_sdf_forward.1} parent=5 // pred_region
        %s162 = ssub.s32 %s23, 1
        // Predicated region
        $region13: #{lotd_forest_sdf_forward.1} parent=11 // pred_check
          %p163 = pneg %p96
        $region14: #{lotd_forest_sdf_forward.1} parent=11 // pred_check_branch
          %165 = sbr.rel (%p163) target = $region16
        $region15: #{lotd_forest_sdf_forward.1} parent=11 // pred_region
          _
        $region16: #{lotd_forest_sdf_forward.1} parent=11 // pred_fallthru
          _
      $region12: #{lotd_forest_sdf_forward.1} parent=5 // pred_fallthru
        _
      %p166 = scmp.lt.s32.totalorder %s23, 2
      // Predicated region
      $region17: #{lotd_forest_sdf_forward.1} parent=5 // pred_check
        %p167 = pneg %p166
      $region18: #{lotd_forest_sdf_forward.1} parent=5 // pred_check_branch
        %169 = sbr.rel (%p167) target = $region20
      $region19: #{lotd_forest_sdf_forward.1} parent=5 // pred_region
        // Predicated region
        $region21: #{lotd_forest_sdf_forward.1} parent=19 // pred_check
          %p170 = pneg %p43
        $region22: #{lotd_forest_sdf_forward.1} parent=19 // pred_check_branch
          %172 = sbr.rel (%p170) target = $region24
        $region23: #{lotd_forest_sdf_forward.1} parent=19 // pred_region
          %s173 = sand.u32 %s33, 1
          %s174 = scalar_lea.sflag [#allocation3], %s173
          %s175 = sand.u32 %s33, 1
          %s176 = smul.addr %s175, 256
          %s177 = scalar_lea.vmem [#allocation2], %s176
          %s178 = smul.u32 64, %s23
          %s180 = ssub.s32 4096, 4096
          %181 = vsyncadd %s174, %s180
          %s182 = smul.addr %s178, 64
          %s183 = scalar_lea.hbm %s0, %s182
          %s185 = sshll.u32 %s177, 4
          %s186 = int_to_ptr.vmem [resolvable:$true] %s185
          %188 = dma.hbm_to_vmem [thread:$0]  %s183, 4096, %s186, %s174
        $region24: #{lotd_forest_sdf_forward.1} parent=19 // pred_fallthru
          _
        // Predicated region
        $region25: #{lotd_forest_sdf_forward.1} parent=19 // pred_check
          %p189 = pneg %p69
        $region26: #{lotd_forest_sdf_forward.1} parent=19 // pred_check_branch
          %191 = sbr.rel (%p189) target = $region28
        $region27: #{lotd_forest_sdf_forward.1} parent=19 // pred_region
          %s192 = sand.u32 %s59, 1
          %s193 = scalar_lea.sflag [#allocation6], %s192
          %s194 = sand.u32 %s59, 1
          %s195 = smul.addr %s194, 2048
          %s196 = scalar_lea.vmem [#allocation5], %s195
          %s197 = smul.u32 64, %s23
          %s199 = ssub.s32 32768, 32768
          %200 = vsyncadd %s193, %s199
          %s201 = smul.addr %s197, 64
          %s202 = scalar_lea.hbm %s1, %s201
          %s203 = sshll.u32 %s196, 4
          %s204 = int_to_ptr.vmem [resolvable:$true] %s203
          %209 = dma.hbm_to_vmem [thread:$0]  %s202, 32768, %s204, %s193, 8192, 4096, 256
        $region28: #{lotd_forest_sdf_forward.1} parent=19 // pred_fallthru
          _
      $region20: #{lotd_forest_sdf_forward.1} parent=5 // pred_fallthru
        _
      %p210 = scmp.le.s32.totalorder 1, %s23
      %p211 = scmp.lt.s32.totalorder %s23, 3
      %p212 = pnand %p210, %p211
      %p213 = pneg %p212
      // Predicated region
      $region29: #{lotd_forest_sdf_forward.1} parent=5 // pred_check
        _
      $region30: #{lotd_forest_sdf_forward.1} parent=5 // pred_check_branch
        %215 = sbr.rel (%p212) target = $region32
      $region31: #{lotd_forest_sdf_forward.1} parent=5 // pred_region
        %s216 = ssub.s32 %s23, 1
        %s217 = sand.u32 %s36, 1
        %s218 = scalar_lea.sflag [#allocation3], %s217
        %s219 = sand.u32 %s36, 1
        %s220 = smul.addr %s219, 256
        %s221 = scalar_lea.vmem [#allocation2], %s220
        // Predicated region
        $region33: #{lotd_forest_sdf_forward.1} parent=31 // pred_check
          %p222 = pneg %p49
        $region34: #{lotd_forest_sdf_forward.1} parent=31 // pred_check_branch
          %224 = sbr.rel (%p222) target = $region36
        $region35: #{lotd_forest_sdf_forward.1} parent=31 // pred_region
          %225 = dma.done %s218, 4096
        $region36: #{lotd_forest_sdf_forward.1} parent=31 // pred_fallthru
          _
        %s226 = sand.u32 %s62, 1
        %s227 = scalar_lea.sflag [#allocation6], %s226
        %s228 = sand.u32 %s62, 1
        %s229 = smul.addr %s228, 2048
        %s230 = scalar_lea.vmem [#allocation5], %s229
        // Predicated region
        $region37: #{lotd_forest_sdf_forward.1} parent=31 // pred_check
          %p231 = pneg %p75
        $region38: #{lotd_forest_sdf_forward.1} parent=31 // pred_check_branch
          %233 = sbr.rel (%p231) target = $region40
        $region39: #{lotd_forest_sdf_forward.1} parent=31 // pred_region
          %234 = dma.done %s227, 32768
        $region40: #{lotd_forest_sdf_forward.1} parent=31 // pred_fallthru
          _
        %s235 = sand.u32 %s36, 1
        %s236 = scalar_lea.sflag [#allocation3], %s235
        %s237 = sand.u32 %s36, 1
        %s238 = smul.addr %s237, 256
        %s239 = scalar_lea.vmem [#allocation2], %s238
        %p240 = pneg %p49
        %p241 = pneg %p46
        %s242 = sand.u32 %s62, 1
        %s243 = scalar_lea.sflag [#allocation6], %s242
        %s244 = sand.u32 %s62, 1
        %s245 = smul.addr %s244, 2048
        %s246 = scalar_lea.vmem [#allocation5], %s245
        %p247 = pneg %p75
        %p248 = pneg %p72
        %p249 = pneg %p96
        %p250 = pneg %p93
        %p251 = pneg %p122
        %p252 = pneg %p119
        %s253 = sand.u32 %s109, 1
        %s254 = scalar_lea.sflag [#allocation4], %s253
        %s255 = sand.u32 %s109, 1
        %s256 = smul.addr %s255, 256
        %s257 = scalar_lea.vmem [#allocation7], %s256
        %p258 = pneg %p148
        %p259 = pneg %p145
        %s260 = sand.u32 %s135, 1
        %s261 = scalar_lea.sflag [#allocation9], %s260
        %s262 = sand.u32 %s135, 1
        %s263 = smul.addr %s262, 64
        %s264 = scalar_lea.vmem [#allocation8], %s263
        %s265 = smul.u32 64, %s28
        %s266 = smul.u32 64, %s28
        %s267 = smul.u32 64, %s28
        %s268 = smul.u32 64, %s28
        %v269 = vld [vmem:[%s2] sm:$0xff]
        %v270 = vld [vmem:[%s2 + $0x8] sm:$0xff]
        %v271 = vld [vmem:[%s2 + $0x10] sm:$0xff]
        %v272 = vld [vmem:[%s2 + $0x18] sm:$0xff]
        %v273 = vld [vmem:[%s2] sm:$0x1]
        loop: start=0, step=1, limit=8
        $region41: #{lotd_forest_sdf_forward.1} parent=31 // loop_pre_header
          _
        $region42: #{lotd_forest_sdf_forward.1} parent=31 // loop_header
          %s275 = sphi 0, %s279
          %p276 = scmp.ge.s32.totalorder %s275, 8
        $region43: #{lotd_forest_sdf_forward.1} parent=31 // loop_header_branch
          %278 = sbr.rel (%p276) target = $region47
        $region44: #{lotd_forest_sdf_forward.1} parent=31 // loop_body
          %s280 = smul.u32 %s275, 1024
          %s281 = sshra.s32 %s280, 7
          %s282 = sand.u32 %s280, 127
          %s283 = smul.addr %s281, 4
          %s284 = scalar_lea.vmem %s221, %s283 [#allocation2]
          %v285 = vld [vmem:[%s284] sm:$0x77]
          %v286 = vld [vmem:[%s284 + $0x8] sm:$0x77]
          %v287 = vld [vmem:[%s284 + $0x10] sm:$0x77]
          %v288 = vld [vmem:[%s284 + $0x18] sm:$0x77]
          %v289 = vadd.f32 %v285, 1.0
          %v290 = vadd.f32 %v286, 1.0
          %v291 = vadd.f32 %v287, 1.0
          %v292 = vadd.f32 %v288, 1.0
          %v293 = vmul.f32 %v289, 1.5
          %v294 = vmul.f32 %v290, 1.5
          %v295 = vmul.f32 %v291, 1.5
          %v296 = vmul.f32 %v292, 1.5
          %v297 = vfloor.f32 %v293
          %v298 = vfloor.f32 %v294
          %v299 = vfloor.f32 %v295
          %v300 = vfloor.f32 %v296
          %v301 = vmax.f32 %v297, 0.0
          %v302 = vmax.f32 %v298, 0.0
          %v303 = vmax.f32 %v299, 0.0
          %v304 = vmax.f32 %v300, 0.0
          %v305 = vmin.f32 %v301, 2.0
          %v306 = vmin.f32 %v302, 2.0
          %v307 = vmin.f32 %v303, 2.0
          %v308 = vmin.f32 %v304, 2.0
          %v309 = vsub.f32 %v293, %v305
          %v310 = vsub.f32 %v294, %v306
          %v311 = vsub.f32 %v295, %v307
          %v312 = vsub.f32 %v296, %v308
          %v313 = vsub.f32 1.0, %v309
          %v314 = vsub.f32 1.0, %v310
          %v315 = vsub.f32 1.0, %v311
          %v316 = vsub.f32 1.0, %v312
          %v321 = vrot.slane %v313, 5
          %v322 = vrot.slane %v321, 4
          %v323 = vrot.slane %v314, 5
          %v324 = vrot.slane %v323, 4
          %v325 = vrot.slane %v315, 5
          %v326 = vrot.slane %v325, 4
          %v327 = vrot.slane %v316, 5
          %v328 = vrot.slane %v327, 4
          %v333 = vmul.f32 %v313, %v322
          %v334 = vmul.f32 %v314, %v324
          %v335 = vmul.f32 %v315, %v326
          %v336 = vmul.f32 %v316, %v328
          %v337 = vrot.slane %v313, 6
          %v338 = vrot.slane %v337, 4
          %v339 = vrot.slane %v314, 6
          %v340 = vrot.slane %v339, 4
          %v341 = vrot.slane %v315, 6
          %v342 = vrot.slane %v341, 4
          %v343 = vrot.slane %v316, 6
          %v344 = vrot.slane %v343, 4
          %v349 = vmul.f32 %v333, %v338
          %v350 = vmul.f32 %v334, %v340
          %v351 = vmul.f32 %v335, %v342
          %v352 = vmul.f32 %v336, %v344
          %s353 = smul.addr %s281, 4
          %s354 = scalar_lea.vmem %s230, %s353 [#allocation5]
          %v355 = vld [vmem:[%s354] sm:$0x33]
          %v356 = vld [vmem:[%s354 + $0x8] sm:$0x33]
          %v357 = vld [vmem:[%s354 + $0x10] sm:$0x33]
          %v358 = vld [vmem:[%s354 + $0x18] sm:$0x33]
          %v359 = vunpack.c.l.bf16 %v355
          %v360 = vunpack.c.h.bf16 %v355
          %v361 = vunpack.c.l.bf16 %v356
          %v362 = vunpack.c.h.bf16 %v356
          %v363 = vunpack.c.l.bf16 %v357
          %v364 = vunpack.c.h.bf16 %v357
          %v365 = vunpack.c.l.bf16 %v358
          %v366 = vunpack.c.h.bf16 %v358
          %v371 = vlaneseq
          %v372 = vshrl.u32 %v371, 7
          %v373 = vsub.s32 0, %v372
          %v374 = vrot.slane %v349, %v373
          %v375 = vlaneseq
          %v376 = vshrl.u32 %v375, 7
          %v377 = vsub.s32 4, %v376
          %v378 = vrot.slane %v349, %v377
          %v379 = vlaneseq
          %v380 = vshrl.u32 %v379, 7
          %v381 = vsub.s32 0, %v380
          %v382 = vrot.slane %v350, %v381
          %v383 = vlaneseq
          %v384 = vshrl.u32 %v383, 7
          %v385 = vsub.s32 4, %v384
          %v386 = vrot.slane %v350, %v385
          %v387 = vlaneseq
          %v388 = vshrl.u32 %v387, 7
          %v389 = vsub.s32 0, %v388
          %v390 = vrot.slane %v351, %v389
          %v391 = vlaneseq
          %v392 = vshrl.u32 %v391, 7
          %v393 = vsub.s32 4, %v392
          %v394 = vrot.slane %v351, %v393
          %v395 = vlaneseq
          %v396 = vshrl.u32 %v395, 7
          %v397 = vsub.s32 0, %v396
          %v398 = vrot.slane %v352, %v397
          %v399 = vlaneseq
          %v400 = vshrl.u32 %v399, 7
          %v401 = vsub.s32 4, %v400
          %v402 = vrot.slane %v352, %v401
          %v411 = vlaneseq
          %v412 = vshrl.u32 %v411, 7
          %v413 = vsub.s32 0, %v412
          %v414 = vrot.slane %v374, %v413
          %v415 = vlaneseq
          %v416 = vshrl.u32 %v415, 7
          %v417 = vsub.s32 0, %v416
          %v418 = vrot.slane %v378, %v417
          %v419 = vlaneseq
          %v420 = vshrl.u32 %v419, 7
          %v421 = vsub.s32 0, %v420
          %v422 = vrot.slane %v382, %v421
          %v423 = vlaneseq
          %v424 = vshrl.u32 %v423, 7
          %v425 = vsub.s32 0, %v424
          %v426 = vrot.slane %v386, %v425
          %v427 = vlaneseq
          %v428 = vshrl.u32 %v427, 7
          %v429 = vsub.s32 0, %v428
          %v430 = vrot.slane %v390, %v429
          %v431 = vlaneseq
          %v432 = vshrl.u32 %v431, 7
          %v433 = vsub.s32 0, %v432
          %v434 = vrot.slane %v394, %v433
          %v435 = vlaneseq
          %v436 = vshrl.u32 %v435, 7
          %v437 = vsub.s32 0, %v436
          %v438 = vrot.slane %v398, %v437
          %v439 = vlaneseq
          %v440 = vshrl.u32 %v439, 7
          %v441 = vsub.s32 0, %v440
          %v442 = vrot.slane %v402, %v441
          %v443 = vmul.f32 %v359, %v414
          %v444 = vmul.f32 %v360, %v418
          %v445 = vmul.f32 %v361, %v422
          %v446 = vmul.f32 %v362, %v426
          %v447 = vmul.f32 %v363, %v430
          %v448 = vmul.f32 %v364, %v434
          %v449 = vmul.f32 %v365, %v438
          %v450 = vmul.f32 %v366, %v442
          %v455 = vrot.slane %v309, 6
          %v456 = vrot.slane %v455, 4
          %v457 = vrot.slane %v310, 6
          %v458 = vrot.slane %v457, 4
          %v459 = vrot.slane %v311, 6
          %v460 = vrot.slane %v459, 4
          %v461 = vrot.slane %v312, 6
          %v462 = vrot.slane %v461, 4
          %v467 = vmul.f32 %v333, %v456
          %v468 = vmul.f32 %v334, %v458
          %v469 = vmul.f32 %v335, %v460
          %v470 = vmul.f32 %v336, %v462
          %v471 = vld [vmem:[%s354] sm:$0xcc]
          %v472 = vld [vmem:[%s354 + $0x8] sm:$0xcc]
          %v473 = vld [vmem:[%s354 + $0x10] sm:$0xcc]
          %v474 = vld [vmem:[%s354 + $0x18] sm:$0xcc]
          %v475 = vunpack.c.l.bf16 %v471
          %v476 = vunpack.c.h.bf16 %v471
          %v477 = vunpack.c.l.bf16 %v472
          %v478 = vunpack.c.h.bf16 %v472
          %v479 = vunpack.c.l.bf16 %v473
          %v480 = vunpack.c.h.bf16 %v473
          %v481 = vunpack.c.l.bf16 %v474
          %v482 = vunpack.c.h.bf16 %v474
          %v487 = vlaneseq
          %v488 = vshrl.u32 %v487, 7
          %v489 = vsub.s32 0, %v488
          %v490 = vrot.slane %v467, %v489
          %v491 = vlaneseq
          %v492 = vshrl.u32 %v491, 7
          %v493 = vsub.s32 4, %v492
          %v494 = vrot.slane %v467, %v493
          %v495 = vlaneseq
          %v496 = vshrl.u32 %v495, 7
          %v497 = vsub.s32 0, %v496
          %v498 = vrot.slane %v468, %v497
          %v499 = vlaneseq
          %v500 = vshrl.u32 %v499, 7
          %v501 = vsub.s32 4, %v500
          %v502 = vrot.slane %v468, %v501
          %v503 = vlaneseq
          %v504 = vshrl.u32 %v503, 7
          %v505 = vsub.s32 0, %v504
          %v506 = vrot.slane %v469, %v505
          %v507 = vlaneseq
          %v508 = vshrl.u32 %v507, 7
          %v509 = vsub.s32 4, %v508
          %v510 = vrot.slane %v469, %v509
          %v511 = vlaneseq
          %v512 = vshrl.u32 %v511, 7
          %v513 = vsub.s32 0, %v512
          %v514 = vrot.slane %v470, %v513
          %v515 = vlaneseq
          %v516 = vshrl.u32 %v515, 7
          %v517 = vsub.s32 4, %v516
          %v518 = vrot.slane %v470, %v517
          %v527 = vlaneseq
          %v528 = vshrl.u32 %v527, 7
          %v529 = vsub.s32 0, %v528
          %v530 = vrot.slane %v490, %v529
          %v531 = vlaneseq
          %v532 = vshrl.u32 %v531, 7
          %v533 = vsub.s32 0, %v532
          %v534 = vrot.slane %v494, %v533
          %v535 = vlaneseq
          %v536 = vshrl.u32 %v535, 7
          %v537 = vsub.s32 0, %v536
          %v538 = vrot.slane %v498, %v537
          %v539 = vlaneseq
          %v540 = vshrl.u32 %v539, 7
          %v541 = vsub.s32 0, %v540
          %v542 = vrot.slane %v502, %v541
          %v543 = vlaneseq
          %v544 = vshrl.u32 %v543, 7
          %v545 = vsub.s32 0, %v544
          %v546 = vrot.slane %v506, %v545
          %v547 = vlaneseq
          %v548 = vshrl.u32 %v547, 7
          %v549 = vsub.s32 0, %v548
          %v550 = vrot.slane %v510, %v549
          %v551 = vlaneseq
          %v552 = vshrl.u32 %v551, 7
          %v553 = vsub.s32 0, %v552
          %v554 = vrot.slane %v514, %v553
          %v555 = vlaneseq
          %v556 = vshrl.u32 %v555, 7
          %v557 = vsub.s32 0, %v556
          %v558 = vrot.slane %v518, %v557
          %v559 = vmul.f32 %v475, %v530
          %v560 = vmul.f32 %v476, %v534
          %v561 = vmul.f32 %v477, %v538
          %v562 = vmul.f32 %v478, %v542
          %v563 = vmul.f32 %v479, %v546
          %v564 = vmul.f32 %v480, %v550
          %v565 = vmul.f32 %v481, %v554
          %v566 = vmul.f32 %v482, %v558
          %v575 = vrot.slane %v559, 4
          %v576 = vrot.slane %v560, 4
          %v577 = vrot.slane %v561, 4
          %v578 = vrot.slane %v562, 4
          %v579 = vrot.slane %v563, 4
          %v580 = vrot.slane %v564, 4
          %v581 = vrot.slane %v565, 4
          %v582 = vrot.slane %v566, 4
          %v591 = vadd.f32 %v443, %v575
          %v592 = vadd.f32 %v444, %v576
          %v593 = vadd.f32 %v445, %v577
          %v594 = vadd.f32 %v446, %v578
          %v595 = vadd.f32 %v447, %v579
          %v596 = vadd.f32 %v448, %v580
          %v597 = vadd.f32 %v449, %v581
          %v598 = vadd.f32 %v450, %v582
          %v599 = vrot.slane %v309, 5
          %v600 = vrot.slane %v599, 4
          %v601 = vrot.slane %v310, 5
          %v602 = vrot.slane %v601, 4
          %v603 = vrot.slane %v311, 5
          %v604 = vrot.slane %v603, 4
          %v605 = vrot.slane %v312, 5
          %v606 = vrot.slane %v605, 4
          %v611 = vmul.f32 %v313, %v600
          %v612 = vmul.f32 %v314, %v602
          %v613 = vmul.f32 %v315, %v604
          %v614 = vmul.f32 %v316, %v606
          %v615 = vmul.f32 %v611, %v338
          %v616 = vmul.f32 %v612, %v340
          %v617 = vmul.f32 %v613, %v342
          %v618 = vmul.f32 %v614, %v344
          %v619 = vld [vmem:[%s354 + $0x100] sm:$0x33]
          %v620 = vld [vmem:[%s354 + $0x108] sm:$0x33]
          %v621 = vld [vmem:[%s354 + $0x110] sm:$0x33]
          %v622 = vld [vmem:[%s354 + $0x118] sm:$0x33]
          %v623 = vunpack.c.l.bf16 %v619
          %v624 = vunpack.c.h.bf16 %v619
          %v625 = vunpack.c.l.bf16 %v620
          %v626 = vunpack.c.h.bf16 %v620
          %v627 = vunpack.c.l.bf16 %v621
          %v628 = vunpack.c.h.bf16 %v621
          %v629 = vunpack.c.l.bf16 %v622
          %v630 = vunpack.c.h.bf16 %v622
          %v635 = vlaneseq
          %v636 = vshrl.u32 %v635, 7
          %v637 = vsub.s32 0, %v636
          %v638 = vrot.slane %v615, %v637
          %v639 = vlaneseq
          %v640 = vshrl.u32 %v639, 7
          %v641 = vsub.s32 4, %v640
          %v642 = vrot.slane %v615, %v641
          %v643 = vlaneseq
          %v644 = vshrl.u32 %v643, 7
          %v645 = vsub.s32 0, %v644
          %v646 = vrot.slane %v616, %v645
          %v647 = vlaneseq
          %v648 = vshrl.u32 %v647, 7
          %v649 = vsub.s32 4, %v648
          %v650 = vrot.slane %v616, %v649
          %v651 = vlaneseq
          %v652 = vshrl.u32 %v651, 7
          %v653 = vsub.s32 0, %v652
          %v654 = vrot.slane %v617, %v653
          %v655 = vlaneseq
          %v656 = vshrl.u32 %v655, 7
          %v657 = vsub.s32 4, %v656
          %v658 = vrot.slane %v617, %v657
          %v659 = vlaneseq
          %v660 = vshrl.u32 %v659, 7
          %v661 = vsub.s32 0, %v660
          %v662 = vrot.slane %v618, %v661
          %v663 = vlaneseq
          %v664 = vshrl.u32 %v663, 7
          %v665 = vsub.s32 4, %v664
          %v666 = vrot.slane %v618, %v665
          %v675 = vlaneseq
          %v676 = vshrl.u32 %v675, 7
          %v677 = vsub.s32 0, %v676
          %v678 = vrot.slane %v638, %v677
          %v679 = vlaneseq
          %v680 = vshrl.u32 %v679, 7
          %v681 = vsub.s32 0, %v680
          %v682 = vrot.slane %v642, %v681
          %v683 = vlaneseq
          %v684 = vshrl.u32 %v683, 7
          %v685 = vsub.s32 0, %v684
          %v686 = vrot.slane %v646, %v685
          %v687 = vlaneseq
          %v688 = vshrl.u32 %v687, 7
          %v689 = vsub.s32 0, %v688
          %v690 = vrot.slane %v650, %v689
          %v691 = vlaneseq
          %v692 = vshrl.u32 %v691, 7
          %v693 = vsub.s32 0, %v692
          %v694 = vrot.slane %v654, %v693
          %v695 = vlaneseq
          %v696 = vshrl.u32 %v695, 7
          %v697 = vsub.s32 0, %v696
          %v698 = vrot.slane %v658, %v697
          %v699 = vlaneseq
          %v700 = vshrl.u32 %v699, 7
          %v701 = vsub.s32 0, %v700
          %v702 = vrot.slane %v662, %v701
          %v703 = vlaneseq
          %v704 = vshrl.u32 %v703, 7
          %v705 = vsub.s32 0, %v704
          %v706 = vrot.slane %v666, %v705
          %v707 = vmul.f32 %v623, %v678
          %v708 = vmul.f32 %v624, %v682
          %v709 = vmul.f32 %v625, %v686
          %v710 = vmul.f32 %v626, %v690
          %v711 = vmul.f32 %v627, %v694
          %v712 = vmul.f32 %v628, %v698
          %v713 = vmul.f32 %v629, %v702
          %v714 = vmul.f32 %v630, %v706
          %v715 = vadd.f32 %v591, %v707
          %v716 = vadd.f32 %v592, %v708
          %v717 = vadd.f32 %v593, %v709
          %v718 = vadd.f32 %v594, %v710
          %v719 = vadd.f32 %v595, %v711
          %v720 = vadd.f32 %v596, %v712
          %v721 = vadd.f32 %v597, %v713
          %v722 = vadd.f32 %v598, %v714
          %v723 = vmul.f32 %v611, %v456
          %v724 = vmul.f32 %v612, %v458
          %v725 = vmul.f32 %v613, %v460
          %v726 = vmul.f32 %v614, %v462
          %v727 = vld [vmem:[%s354 + $0x100] sm:$0xcc]
          %v728 = vld [vmem:[%s354 + $0x108] sm:$0xcc]
          %v729 = vld [vmem:[%s354 + $0x110] sm:$0xcc]
          %v730 = vld [vmem:[%s354 + $0x118] sm:$0xcc]
          %v731 = vunpack.c.l.bf16 %v727
          %v732 = vunpack.c.h.bf16 %v727
          %v733 = vunpack.c.l.bf16 %v728
          %v734 = vunpack.c.h.bf16 %v728
          %v735 = vunpack.c.l.bf16 %v729
          %v736 = vunpack.c.h.bf16 %v729
          %v737 = vunpack.c.l.bf16 %v730
          %v738 = vunpack.c.h.bf16 %v730
          %v743 = vlaneseq
          %v744 = vshrl.u32 %v743, 7
          %v745 = vsub.s32 0, %v744
          %v746 = vrot.slane %v723, %v745
          %v747 = vlaneseq
          %v748 = vshrl.u32 %v747, 7
          %v749 = vsub.s32 4, %v748
          %v750 = vrot.slane %v723, %v749
          %v751 = vlaneseq
          %v752 = vshrl.u32 %v751, 7
          %v753 = vsub.s32 0, %v752
          %v754 = vrot.slane %v724, %v753
          %v755 = vlaneseq
          %v756 = vshrl.u32 %v755, 7
          %v757 = vsub.s32 4, %v756
          %v758 = vrot.slane %v724, %v757
          %v759 = vlaneseq
          %v760 = vshrl.u32 %v759, 7
          %v761 = vsub.s32 0, %v760
          %v762 = vrot.slane %v725, %v761
          %v763 = vlaneseq
          %v764 = vshrl.u32 %v763, 7
          %v765 = vsub.s32 4, %v764
          %v766 = vrot.slane %v725, %v765
          %v767 = vlaneseq
          %v768 = vshrl.u32 %v767, 7
          %v769 = vsub.s32 0, %v768
          %v770 = vrot.slane %v726, %v769
          %v771 = vlaneseq
          %v772 = vshrl.u32 %v771, 7
          %v773 = vsub.s32 4, %v772
          %v774 = vrot.slane %v726, %v773
          %v783 = vlaneseq
          %v784 = vshrl.u32 %v783, 7
          %v785 = vsub.s32 0, %v784
          %v786 = vrot.slane %v746, %v785
          %v787 = vlaneseq
          %v788 = vshrl.u32 %v787, 7
          %v789 = vsub.s32 0, %v788
          %v790 = vrot.slane %v750, %v789
          %v791 = vlaneseq
          %v792 = vshrl.u32 %v791, 7
          %v793 = vsub.s32 0, %v792
          %v794 = vrot.slane %v754, %v793
          %v795 = vlaneseq
          %v796 = vshrl.u32 %v795, 7
          %v797 = vsub.s32 0, %v796
          %v798 = vrot.slane %v758, %v797
          %v799 = vlaneseq
          %v800 = vshrl.u32 %v799, 7
          %v801 = vsub.s32 0, %v800
          %v802 = vrot.slane %v762, %v801
          %v803 = vlaneseq
          %v804 = vshrl.u32 %v803, 7
          %v805 = vsub.s32 0, %v804
          %v806 = vrot.slane %v766, %v805
          %v807 = vlaneseq
          %v808 = vshrl.u32 %v807, 7
          %v809 = vsub.s32 0, %v808
          %v810 = vrot.slane %v770, %v809
          %v811 = vlaneseq
          %v812 = vshrl.u32 %v811, 7
          %v813 = vsub.s32 0, %v812
          %v814 = vrot.slane %v774, %v813
          %v815 = vmul.f32 %v731, %v786
          %v816 = vmul.f32 %v732, %v790
          %v817 = vmul.f32 %v733, %v794
          %v818 = vmul.f32 %v734, %v798
          %v819 = vmul.f32 %v735, %v802
          %v820 = vmul.f32 %v736, %v806
          %v821 = vmul.f32 %v737, %v810
          %v822 = vmul.f32 %v738, %v814
          %v831 = vrot.slane %v815, 4
          %v832 = vrot.slane %v816, 4
          %v833 = vrot.slane %v817, 4
          %v834 = vrot.slane %v818, 4
          %v835 = vrot.slane %v819, 4
          %v836 = vrot.slane %v820, 4
          %v837 = vrot.slane %v821, 4
          %v838 = vrot.slane %v822, 4
          %v847 = vadd.f32 %v715, %v831
          %v848 = vadd.f32 %v716, %v832
          %v849 = vadd.f32 %v717, %v833
          %v850 = vadd.f32 %v718, %v834
          %v851 = vadd.f32 %v719, %v835
          %v852 = vadd.f32 %v720, %v836
          %v853 = vadd.f32 %v721, %v837
          %v854 = vadd.f32 %v722, %v838
          %v855 = vmul.f32 %v309, %v322
          %v856 = vmul.f32 %v310, %v324
          %v857 = vmul.f32 %v311, %v326
          %v858 = vmul.f32 %v312, %v328
          %v859 = vmul.f32 %v855, %v338
          %v860 = vmul.f32 %v856, %v340
          %v861 = vmul.f32 %v857, %v342
          %v862 = vmul.f32 %v858, %v344
          %v863 = vld [vmem:[%s354 + $0x200] sm:$0x33]
          %v864 = vld [vmem:[%s354 + $0x208] sm:$0x33]
          %v865 = vld [vmem:[%s354 + $0x210] sm:$0x33]
          %v866 = vld [vmem:[%s354 + $0x218] sm:$0x33]
          %v867 = vunpack.c.l.bf16 %v863
          %v868 = vunpack.c.h.bf16 %v863
          %v869 = vunpack.c.l.bf16 %v864
          %v870 = vunpack.c.h.bf16 %v864
          %v871 = vunpack.c.l.bf16 %v865
          %v872 = vunpack.c.h.bf16 %v865
          %v873 = vunpack.c.l.bf16 %v866
          %v874 = vunpack.c.h.bf16 %v866
          %v879 = vlaneseq
          %v880 = vshrl.u32 %v879, 7
          %v881 = vsub.s32 0, %v880
          %v882 = vrot.slane %v859, %v881
          %v883 = vlaneseq
          %v884 = vshrl.u32 %v883, 7
          %v885 = vsub.s32 4, %v884
          %v886 = vrot.slane %v859, %v885
          %v887 = vlaneseq
          %v888 = vshrl.u32 %v887, 7
          %v889 = vsub.s32 0, %v888
          %v890 = vrot.slane %v860, %v889
          %v891 = vlaneseq
          %v892 = vshrl.u32 %v891, 7
          %v893 = vsub.s32 4, %v892
          %v894 = vrot.slane %v860, %v893
          %v895 = vlaneseq
          %v896 = vshrl.u32 %v895, 7
          %v897 = vsub.s32 0, %v896
          %v898 = vrot.slane %v861, %v897
          %v899 = vlaneseq
          %v900 = vshrl.u32 %v899, 7
          %v901 = vsub.s32 4, %v900
          %v902 = vrot.slane %v861, %v901
          %v903 = vlaneseq
          %v904 = vshrl.u32 %v903, 7
          %v905 = vsub.s32 0, %v904
          %v906 = vrot.slane %v862, %v905
          %v907 = vlaneseq
          %v908 = vshrl.u32 %v907, 7
          %v909 = vsub.s32 4, %v908
          %v910 = vrot.slane %v862, %v909
          %v919 = vlaneseq
          %v920 = vshrl.u32 %v919, 7
          %v921 = vsub.s32 0, %v920
          %v922 = vrot.slane %v882, %v921
          %v923 = vlaneseq
          %v924 = vshrl.u32 %v923, 7
          %v925 = vsub.s32 0, %v924
          %v926 = vrot.slane %v886, %v925
          %v927 = vlaneseq
          %v928 = vshrl.u32 %v927, 7
          %v929 = vsub.s32 0, %v928
          %v930 = vrot.slane %v890, %v929
          %v931 = vlaneseq
          %v932 = vshrl.u32 %v931, 7
          %v933 = vsub.s32 0, %v932
          %v934 = vrot.slane %v894, %v933
          %v935 = vlaneseq
          %v936 = vshrl.u32 %v935, 7
          %v937 = vsub.s32 0, %v936
          %v938 = vrot.slane %v898, %v937
          %v939 = vlaneseq
          %v940 = vshrl.u32 %v939, 7
          %v941 = vsub.s32 0, %v940
          %v942 = vrot.slane %v902, %v941
          %v943 = vlaneseq
          %v944 = vshrl.u32 %v943, 7
          %v945 = vsub.s32 0, %v944
          %v946 = vrot.slane %v906, %v945
          %v947 = vlaneseq
          %v948 = vshrl.u32 %v947, 7
          %v949 = vsub.s32 0, %v948
          %v950 = vrot.slane %v910, %v949
          %v951 = vmul.f32 %v867, %v922
          %v952 = vmul.f32 %v868, %v926
          %v953 = vmul.f32 %v869, %v930
          %v954 = vmul.f32 %v870, %v934
          %v955 = vmul.f32 %v871, %v938
          %v956 = vmul.f32 %v872, %v942
          %v957 = vmul.f32 %v873, %v946
          %v958 = vmul.f32 %v874, %v950
          %v959 = vadd.f32 %v847, %v951
          %v960 = vadd.f32 %v848, %v952
          %v961 = vadd.f32 %v849, %v953
          %v962 = vadd.f32 %v850, %v954
          %v963 = vadd.f32 %v851, %v955
          %v964 = vadd.f32 %v852, %v956
          %v965 = vadd.f32 %v853, %v957
          %v966 = vadd.f32 %v854, %v958
          %v967 = vmul.f32 %v855, %v456
          %v968 = vmul.f32 %v856, %v458
          %v969 = vmul.f32 %v857, %v460
          %v970 = vmul.f32 %v858, %v462
          %v971 = vld [vmem:[%s354 + $0x200] sm:$0xcc]
          %v972 = vld [vmem:[%s354 + $0x208] sm:$0xcc]
          %v973 = vld [vmem:[%s354 + $0x210] sm:$0xcc]
          %v974 = vld [vmem:[%s354 + $0x218] sm:$0xcc]
          %v975 = vunpack.c.l.bf16 %v971
          %v976 = vunpack.c.h.bf16 %v971
          %v977 = vunpack.c.l.bf16 %v972
          %v978 = vunpack.c.h.bf16 %v972
          %v979 = vunpack.c.l.bf16 %v973
          %v980 = vunpack.c.h.bf16 %v973
          %v981 = vunpack.c.l.bf16 %v974
          %v982 = vunpack.c.h.bf16 %v974
          %v987 = vlaneseq
          %v988 = vshrl.u32 %v987, 7
          %v989 = vsub.s32 0, %v988
          %v990 = vrot.slane %v967, %v989
          %v991 = vlaneseq
          %v992 = vshrl.u32 %v991, 7
          %v993 = vsub.s32 4, %v992
          %v994 = vrot.slane %v967, %v993
          %v995 = vlaneseq
          %v996 = vshrl.u32 %v995, 7
          %v997 = vsub.s32 0, %v996
          %v998 = vrot.slane %v968, %v997
          %v999 = vlaneseq
          %v1000 = vshrl.u32 %v999, 7
          %v1001 = vsub.s32 4, %v1000
          %v1002 = vrot.slane %v968, %v1001
          %v1003 = vlaneseq
          %v1004 = vshrl.u32 %v1003, 7
          %v1005 = vsub.s32 0, %v1004
          %v1006 = vrot.slane %v969, %v1005
          %v1007 = vlaneseq
          %v1008 = vshrl.u32 %v1007, 7
          %v1009 = vsub.s32 4, %v1008
          %v1010 = vrot.slane %v969, %v1009
          %v1011 = vlaneseq
          %v1012 = vshrl.u32 %v1011, 7
          %v1013 = vsub.s32 0, %v1012
          %v1014 = vrot.slane %v970, %v1013
          %v1015 = vlaneseq
          %v1016 = vshrl.u32 %v1015, 7
          %v1017 = vsub.s32 4, %v1016
          %v1018 = vrot.slane %v970, %v1017
          %v1027 = vlaneseq
          %v1028 = vshrl.u32 %v1027, 7
          %v1029 = vsub.s32 0, %v1028
          %v1030 = vrot.slane %v990, %v1029
          %v1031 = vlaneseq
          %v1032 = vshrl.u32 %v1031, 7
          %v1033 = vsub.s32 0, %v1032
          %v1034 = vrot.slane %v994, %v1033
          %v1035 = vlaneseq
          %v1036 = vshrl.u32 %v1035, 7
          %v1037 = vsub.s32 0, %v1036
          %v1038 = vrot.slane %v998, %v1037
          %v1039 = vlaneseq
          %v1040 = vshrl.u32 %v1039, 7
          %v1041 = vsub.s32 0, %v1040
          %v1042 = vrot.slane %v1002, %v1041
          %v1043 = vlaneseq
          %v1044 = vshrl.u32 %v1043, 7
          %v1045 = vsub.s32 0, %v1044
          %v1046 = vrot.slane %v1006, %v1045
          %v1047 = vlaneseq
          %v1048 = vshrl.u32 %v1047, 7
          %v1049 = vsub.s32 0, %v1048
          %v1050 = vrot.slane %v1010, %v1049
          %v1051 = vlaneseq
          %v1052 = vshrl.u32 %v1051, 7
          %v1053 = vsub.s32 0, %v1052
          %v1054 = vrot.slane %v1014, %v1053
          %v1055 = vlaneseq
          %v1056 = vshrl.u32 %v1055, 7
          %v1057 = vsub.s32 0, %v1056
          %v1058 = vrot.slane %v1018, %v1057
          %v1059 = vmul.f32 %v975, %v1030
          %v1060 = vmul.f32 %v976, %v1034
          %v1061 = vmul.f32 %v977, %v1038
          %v1062 = vmul.f32 %v978, %v1042
          %v1063 = vmul.f32 %v979, %v1046
          %v1064 = vmul.f32 %v980, %v1050
          %v1065 = vmul.f32 %v981, %v1054
          %v1066 = vmul.f32 %v982, %v1058
          %v1075 = vrot.slane %v1059, 4
          %v1076 = vrot.slane %v1060, 4
          %v1077 = vrot.slane %v1061, 4
          %v1078 = vrot.slane %v1062, 4
          %v1079 = vrot.slane %v1063, 4
          %v1080 = vrot.slane %v1064, 4
          %v1081 = vrot.slane %v1065, 4
          %v1082 = vrot.slane %v1066, 4
          %v1091 = vadd.f32 %v959, %v1075
          %v1092 = vadd.f32 %v960, %v1076
          %v1093 = vadd.f32 %v961, %v1077
          %v1094 = vadd.f32 %v962, %v1078
          %v1095 = vadd.f32 %v963, %v1079
          %v1096 = vadd.f32 %v964, %v1080
          %v1097 = vadd.f32 %v965, %v1081
          %v1098 = vadd.f32 %v966, %v1082
          %v1099 = vmul.f32 %v309, %v600
          %v1100 = vmul.f32 %v310, %v602
          %v1101 = vmul.f32 %v311, %v604
          %v1102 = vmul.f32 %v312, %v606
          %v1103 = vmul.f32 %v1099, %v338
          %v1104 = vmul.f32 %v1100, %v340
          %v1105 = vmul.f32 %v1101, %v342
          %v1106 = vmul.f32 %v1102, %v344
          %v1107 = vld [vmem:[%s354 + $0x300] sm:$0x33]
          %v1108 = vld [vmem:[%s354 + $0x308] sm:$0x33]
          %v1109 = vld [vmem:[%s354 + $0x310] sm:$0x33]
          %v1110 = vld [vmem:[%s354 + $0x318] sm:$0x33]
          %v1111 = vunpack.c.l.bf16 %v1107
          %v1112 = vunpack.c.h.bf16 %v1107
          %v1113 = vunpack.c.l.bf16 %v1108
          %v1114 = vunpack.c.h.bf16 %v1108
          %v1115 = vunpack.c.l.bf16 %v1109
          %v1116 = vunpack.c.h.bf16 %v1109
          %v1117 = vunpack.c.l.bf16 %v1110
          %v1118 = vunpack.c.h.bf16 %v1110
          %v1123 = vlaneseq
          %v1124 = vshrl.u32 %v1123, 7
          %v1125 = vsub.s32 0, %v1124
          %v1126 = vrot.slane %v1103, %v1125
          %v1127 = vlaneseq
          %v1128 = vshrl.u32 %v1127, 7
          %v1129 = vsub.s32 4, %v1128
          %v1130 = vrot.slane %v1103, %v1129
          %v1131 = vlaneseq
          %v1132 = vshrl.u32 %v1131, 7
          %v1133 = vsub.s32 0, %v1132
          %v1134 = vrot.slane %v1104, %v1133
          %v1135 = vlaneseq
          %v1136 = vshrl.u32 %v1135, 7
          %v1137 = vsub.s32 4, %v1136
          %v1138 = vrot.slane %v1104, %v1137
          %v1139 = vlaneseq
          %v1140 = vshrl.u32 %v1139, 7
          %v1141 = vsub.s32 0, %v1140
          %v1142 = vrot.slane %v1105, %v1141
          %v1143 = vlaneseq
          %v1144 = vshrl.u32 %v1143, 7
          %v1145 = vsub.s32 4, %v1144
          %v1146 = vrot.slane %v1105, %v1145
          %v1147 = vlaneseq
          %v1148 = vshrl.u32 %v1147, 7
          %v1149 = vsub.s32 0, %v1148
          %v1150 = vrot.slane %v1106, %v1149
          %v1151 = vlaneseq
          %v1152 = vshrl.u32 %v1151, 7
          %v1153 = vsub.s32 4, %v1152
          %v1154 = vrot.slane %v1106, %v1153
          %v1163 = vlaneseq
          %v1164 = vshrl.u32 %v1163, 7
          %v1165 = vsub.s32 0, %v1164
          %v1166 = vrot.slane %v1126, %v1165
          %v1167 = vlaneseq
          %v1168 = vshrl.u32 %v1167, 7
          %v1169 = vsub.s32 0, %v1168
          %v1170 = vrot.slane %v1130, %v1169
          %v1171 = vlaneseq
          %v1172 = vshrl.u32 %v1171, 7
          %v1173 = vsub.s32 0, %v1172
          %v1174 = vrot.slane %v1134, %v1173
          %v1175 = vlaneseq
          %v1176 = vshrl.u32 %v1175, 7
          %v1177 = vsub.s32 0, %v1176
          %v1178 = vrot.slane %v1138, %v1177
          %v1179 = vlaneseq
          %v1180 = vshrl.u32 %v1179, 7
          %v1181 = vsub.s32 0, %v1180
          %v1182 = vrot.slane %v1142, %v1181
          %v1183 = vlaneseq
          %v1184 = vshrl.u32 %v1183, 7
          %v1185 = vsub.s32 0, %v1184
          %v1186 = vrot.slane %v1146, %v1185
          %v1187 = vlaneseq
          %v1188 = vshrl.u32 %v1187, 7
          %v1189 = vsub.s32 0, %v1188
          %v1190 = vrot.slane %v1150, %v1189
          %v1191 = vlaneseq
          %v1192 = vshrl.u32 %v1191, 7
          %v1193 = vsub.s32 0, %v1192
          %v1194 = vrot.slane %v1154, %v1193
          %v1195 = vmul.f32 %v1111, %v1166
          %v1196 = vmul.f32 %v1112, %v1170
          %v1197 = vmul.f32 %v1113, %v1174
          %v1198 = vmul.f32 %v1114, %v1178
          %v1199 = vmul.f32 %v1115, %v1182
          %v1200 = vmul.f32 %v1116, %v1186
          %v1201 = vmul.f32 %v1117, %v1190
          %v1202 = vmul.f32 %v1118, %v1194
          %v1203 = vadd.f32 %v1091, %v1195
          %v1204 = vadd.f32 %v1092, %v1196
          %v1205 = vadd.f32 %v1093, %v1197
          %v1206 = vadd.f32 %v1094, %v1198
          %v1207 = vadd.f32 %v1095, %v1199
          %v1208 = vadd.f32 %v1096, %v1200
          %v1209 = vadd.f32 %v1097, %v1201
          %v1210 = vadd.f32 %v1098, %v1202
          %v1211 = vmul.f32 %v1099, %v456
          %v1212 = vmul.f32 %v1100, %v458
          %v1213 = vmul.f32 %v1101, %v460
          %v1214 = vmul.f32 %v1102, %v462
          %v1215 = vld [vmem:[%s354 + $0x300] sm:$0xcc]
          %v1216 = vld [vmem:[%s354 + $0x308] sm:$0xcc]
          %v1217 = vld [vmem:[%s354 + $0x310] sm:$0xcc]
          %v1218 = vld [vmem:[%s354 + $0x318] sm:$0xcc]
          %v1219 = vunpack.c.l.bf16 %v1215
          %v1220 = vunpack.c.h.bf16 %v1215
          %v1221 = vunpack.c.l.bf16 %v1216
          %v1222 = vunpack.c.h.bf16 %v1216
          %v1223 = vunpack.c.l.bf16 %v1217
          %v1224 = vunpack.c.h.bf16 %v1217
          %v1225 = vunpack.c.l.bf16 %v1218
          %v1226 = vunpack.c.h.bf16 %v1218
          %v1231 = vlaneseq
          %v1232 = vshrl.u32 %v1231, 7
          %v1233 = vsub.s32 0, %v1232
          %v1234 = vrot.slane %v1211, %v1233
          %v1235 = vlaneseq
          %v1236 = vshrl.u32 %v1235, 7
          %v1237 = vsub.s32 4, %v1236
          %v1238 = vrot.slane %v1211, %v1237
          %v1239 = vlaneseq
          %v1240 = vshrl.u32 %v1239, 7
          %v1241 = vsub.s32 0, %v1240
          %v1242 = vrot.slane %v1212, %v1241
          %v1243 = vlaneseq
          %v1244 = vshrl.u32 %v1243, 7
          %v1245 = vsub.s32 4, %v1244
          %v1246 = vrot.slane %v1212, %v1245
          %v1247 = vlaneseq
          %v1248 = vshrl.u32 %v1247, 7
          %v1249 = vsub.s32 0, %v1248
          %v1250 = vrot.slane %v1213, %v1249
          %v1251 = vlaneseq
          %v1252 = vshrl.u32 %v1251, 7
          %v1253 = vsub.s32 4, %v1252
          %v1254 = vrot.slane %v1213, %v1253
          %v1255 = vlaneseq
          %v1256 = vshrl.u32 %v1255, 7
          %v1257 = vsub.s32 0, %v1256
          %v1258 = vrot.slane %v1214, %v1257
          %v1259 = vlaneseq
          %v1260 = vshrl.u32 %v1259, 7
          %v1261 = vsub.s32 4, %v1260
          %v1262 = vrot.slane %v1214, %v1261
          %v1271 = vlaneseq
          %v1272 = vshrl.u32 %v1271, 7
          %v1273 = vsub.s32 0, %v1272
          %v1274 = vrot.slane %v1234, %v1273
          %v1275 = vlaneseq
          %v1276 = vshrl.u32 %v1275, 7
          %v1277 = vsub.s32 0, %v1276
          %v1278 = vrot.slane %v1238, %v1277
          %v1279 = vlaneseq
          %v1280 = vshrl.u32 %v1279, 7
          %v1281 = vsub.s32 0, %v1280
          %v1282 = vrot.slane %v1242, %v1281
          %v1283 = vlaneseq
          %v1284 = vshrl.u32 %v1283, 7
          %v1285 = vsub.s32 0, %v1284
          %v1286 = vrot.slane %v1246, %v1285
          %v1287 = vlaneseq
          %v1288 = vshrl.u32 %v1287, 7
          %v1289 = vsub.s32 0, %v1288
          %v1290 = vrot.slane %v1250, %v1289
          %v1291 = vlaneseq
          %v1292 = vshrl.u32 %v1291, 7
          %v1293 = vsub.s32 0, %v1292
          %v1294 = vrot.slane %v1254, %v1293
          %v1295 = vlaneseq
          %v1296 = vshrl.u32 %v1295, 7
          %v1297 = vsub.s32 0, %v1296
          %v1298 = vrot.slane %v1258, %v1297
          %v1299 = vlaneseq
          %v1300 = vshrl.u32 %v1299, 7
          %v1301 = vsub.s32 0, %v1300
          %v1302 = vrot.slane %v1262, %v1301
          %v1303 = vmul.f32 %v1219, %v1274
          %v1304 = vmul.f32 %v1220, %v1278
          %v1305 = vmul.f32 %v1221, %v1282
          %v1306 = vmul.f32 %v1222, %v1286
          %v1307 = vmul.f32 %v1223, %v1290
          %v1308 = vmul.f32 %v1224, %v1294
          %v1309 = vmul.f32 %v1225, %v1298
          %v1310 = vmul.f32 %v1226, %v1302
          %v1319 = vrot.slane %v1303, 4
          %v1320 = vrot.slane %v1304, 4
          %v1321 = vrot.slane %v1305, 4
          %v1322 = vrot.slane %v1306, 4
          %v1323 = vrot.slane %v1307, 4
          %v1324 = vrot.slane %v1308, 4
          %v1325 = vrot.slane %v1309, 4
          %v1326 = vrot.slane %v1310, 4
          %v1335 = vadd.f32 %v1203, %v1319
          %v1336 = vadd.f32 %v1204, %v1320
          %v1337 = vadd.f32 %v1205, %v1321
          %v1338 = vadd.f32 %v1206, %v1322
          %v1339 = vadd.f32 %v1207, %v1323
          %v1340 = vadd.f32 %v1208, %v1324
          %v1341 = vadd.f32 %v1209, %v1325
          %v1342 = vadd.f32 %v1210, %v1326
          %v1343 = vmul.f32 %v289, 3.5
          %v1344 = vmul.f32 %v290, 3.5
          %v1345 = vmul.f32 %v291, 3.5
          %v1346 = vmul.f32 %v292, 3.5
          %v1347 = vfloor.f32 %v1343
          %v1348 = vfloor.f32 %v1344
          %v1349 = vfloor.f32 %v1345
          %v1350 = vfloor.f32 %v1346
          %v1351 = vmax.f32 %v1347, 0.0
          %v1352 = vmax.f32 %v1348, 0.0
          %v1353 = vmax.f32 %v1349, 0.0
          %v1354 = vmax.f32 %v1350, 0.0
          %v1355 = vmin.f32 %v1351, 6.0
          %v1356 = vmin.f32 %v1352, 6.0
          %v1357 = vmin.f32 %v1353, 6.0
          %v1358 = vmin.f32 %v1354, 6.0
          %v1359 = vsub.f32 %v1343, %v1355
          %v1360 = vsub.f32 %v1344, %v1356
          %v1361 = vsub.f32 %v1345, %v1357
          %v1362 = vsub.f32 %v1346, %v1358
          %v1363 = vsub.f32 1.0, %v1359
          %v1364 = vsub.f32 1.0, %v1360
          %v1365 = vsub.f32 1.0, %v1361
          %v1366 = vsub.f32 1.0, %v1362
          %v1371 = vrot.slane %v1363, 5
          %v1372 = vrot.slane %v1371, 4
          %v1373 = vrot.slane %v1364, 5
          %v1374 = vrot.slane %v1373, 4
          %v1375 = vrot.slane %v1365, 5
          %v1376 = vrot.slane %v1375, 4
          %v1377 = vrot.slane %v1366, 5
          %v1378 = vrot.slane %v1377, 4
          %v1383 = vmul.f32 %v1363, %v1372
          %v1384 = vmul.f32 %v1364, %v1374
          %v1385 = vmul.f32 %v1365, %v1376
          %v1386 = vmul.f32 %v1366, %v1378
          %v1387 = vrot.slane %v1363, 6
          %v1388 = vrot.slane %v1387, 4
          %v1389 = vrot.slane %v1364, 6
          %v1390 = vrot.slane %v1389, 4
          %v1391 = vrot.slane %v1365, 6
          %v1392 = vrot.slane %v1391, 4
          %v1393 = vrot.slane %v1366, 6
          %v1394 = vrot.slane %v1393, 4
          %v1399 = vmul.f32 %v1383, %v1388
          %v1400 = vmul.f32 %v1384, %v1390
          %v1401 = vmul.f32 %v1385, %v1392
          %v1402 = vmul.f32 %v1386, %v1394
          %v1403 = vld [vmem:[%s354 + $0x400] sm:$0x33]
          %v1404 = vld [vmem:[%s354 + $0x408] sm:$0x33]
          %v1405 = vld [vmem:[%s354 + $0x410] sm:$0x33]
          %v1406 = vld [vmem:[%s354 + $0x418] sm:$0x33]
          %v1407 = vunpack.c.l.bf16 %v1403
          %v1408 = vunpack.c.h.bf16 %v1403
          %v1409 = vunpack.c.l.bf16 %v1404
          %v1410 = vunpack.c.h.bf16 %v1404
          %v1411 = vunpack.c.l.bf16 %v1405
          %v1412 = vunpack.c.h.bf16 %v1405
          %v1413 = vunpack.c.l.bf16 %v1406
          %v1414 = vunpack.c.h.bf16 %v1406
          %v1419 = vlaneseq
          %v1420 = vshrl.u32 %v1419, 7
          %v1421 = vsub.s32 0, %v1420
          %v1422 = vrot.slane %v1399, %v1421
          %v1423 = vlaneseq
          %v1424 = vshrl.u32 %v1423, 7
          %v1425 = vsub.s32 4, %v1424
          %v1426 = vrot.slane %v1399, %v1425
          %v1427 = vlaneseq
          %v1428 = vshrl.u32 %v1427, 7
          %v1429 = vsub.s32 0, %v1428
          %v1430 = vrot.slane %v1400, %v1429
          %v1431 = vlaneseq
          %v1432 = vshrl.u32 %v1431, 7
          %v1433 = vsub.s32 4, %v1432
          %v1434 = vrot.slane %v1400, %v1433
          %v1435 = vlaneseq
          %v1436 = vshrl.u32 %v1435, 7
          %v1437 = vsub.s32 0, %v1436
          %v1438 = vrot.slane %v1401, %v1437
          %v1439 = vlaneseq
          %v1440 = vshrl.u32 %v1439, 7
          %v1441 = vsub.s32 4, %v1440
          %v1442 = vrot.slane %v1401, %v1441
          %v1443 = vlaneseq
          %v1444 = vshrl.u32 %v1443, 7
          %v1445 = vsub.s32 0, %v1444
          %v1446 = vrot.slane %v1402, %v1445
          %v1447 = vlaneseq
          %v1448 = vshrl.u32 %v1447, 7
          %v1449 = vsub.s32 4, %v1448
          %v1450 = vrot.slane %v1402, %v1449
          %v1459 = vlaneseq
          %v1460 = vshrl.u32 %v1459, 7
          %v1461 = vsub.s32 0, %v1460
          %v1462 = vrot.slane %v1422, %v1461
          %v1463 = vlaneseq
          %v1464 = vshrl.u32 %v1463, 7
          %v1465 = vsub.s32 0, %v1464
          %v1466 = vrot.slane %v1426, %v1465
          %v1467 = vlaneseq
          %v1468 = vshrl.u32 %v1467, 7
          %v1469 = vsub.s32 0, %v1468
          %v1470 = vrot.slane %v1430, %v1469
          %v1471 = vlaneseq
          %v1472 = vshrl.u32 %v1471, 7
          %v1473 = vsub.s32 0, %v1472
          %v1474 = vrot.slane %v1434, %v1473
          %v1475 = vlaneseq
          %v1476 = vshrl.u32 %v1475, 7
          %v1477 = vsub.s32 0, %v1476
          %v1478 = vrot.slane %v1438, %v1477
          %v1479 = vlaneseq
          %v1480 = vshrl.u32 %v1479, 7
          %v1481 = vsub.s32 0, %v1480
          %v1482 = vrot.slane %v1442, %v1481
          %v1483 = vlaneseq
          %v1484 = vshrl.u32 %v1483, 7
          %v1485 = vsub.s32 0, %v1484
          %v1486 = vrot.slane %v1446, %v1485
          %v1487 = vlaneseq
          %v1488 = vshrl.u32 %v1487, 7
          %v1489 = vsub.s32 0, %v1488
          %v1490 = vrot.slane %v1450, %v1489
          %v1491 = vmul.f32 %v1407, %v1462
          %v1492 = vmul.f32 %v1408, %v1466
          %v1493 = vmul.f32 %v1409, %v1470
          %v1494 = vmul.f32 %v1410, %v1474
          %v1495 = vmul.f32 %v1411, %v1478
          %v1496 = vmul.f32 %v1412, %v1482
          %v1497 = vmul.f32 %v1413, %v1486
          %v1498 = vmul.f32 %v1414, %v1490
          %v1503 = vrot.slane %v1359, 6
          %v1504 = vrot.slane %v1503, 4
          %v1505 = vrot.slane %v1360, 6
          %v1506 = vrot.slane %v1505, 4
          %v1507 = vrot.slane %v1361, 6
          %v1508 = vrot.slane %v1507, 4
          %v1509 = vrot.slane %v1362, 6
          %v1510 = vrot.slane %v1509, 4
          %v1515 = vmul.f32 %v1383, %v1504
          %v1516 = vmul.f32 %v1384, %v1506
          %v1517 = vmul.f32 %v1385, %v1508
          %v1518 = vmul.f32 %v1386, %v1510
          %v1519 = vld [vmem:[%s354 + $0x400] sm:$0xcc]
          %v1520 = vld [vmem:[%s354 + $0x408] sm:$0xcc]
          %v1521 = vld [vmem:[%s354 + $0x410] sm:$0xcc]
          %v1522 = vld [vmem:[%s354 + $0x418] sm:$0xcc]
          %v1523 = vunpack.c.l.bf16 %v1519
          %v1524 = vunpack.c.h.bf16 %v1519
          %v1525 = vunpack.c.l.bf16 %v1520
          %v1526 = vunpack.c.h.bf16 %v1520
          %v1527 = vunpack.c.l.bf16 %v1521
          %v1528 = vunpack.c.h.bf16 %v1521
          %v1529 = vunpack.c.l.bf16 %v1522
          %v1530 = vunpack.c.h.bf16 %v1522
          %v1535 = vlaneseq
          %v1536 = vshrl.u32 %v1535, 7
          %v1537 = vsub.s32 0, %v1536
          %v1538 = vrot.slane %v1515, %v1537
          %v1539 = vlaneseq
          %v1540 = vshrl.u32 %v1539, 7
          %v1541 = vsub.s32 4, %v1540
          %v1542 = vrot.slane %v1515, %v1541
          %v1543 = vlaneseq
          %v1544 = vshrl.u32 %v1543, 7
          %v1545 = vsub.s32 0, %v1544
          %v1546 = vrot.slane %v1516, %v1545
          %v1547 = vlaneseq
          %v1548 = vshrl.u32 %v1547, 7
          %v1549 = vsub.s32 4, %v1548
          %v1550 = vrot.slane %v1516, %v1549
          %v1551 = vlaneseq
          %v1552 = vshrl.u32 %v1551, 7
          %v1553 = vsub.s32 0, %v1552
          %v1554 = vrot.slane %v1517, %v1553
          %v1555 = vlaneseq
          %v1556 = vshrl.u32 %v1555, 7
          %v1557 = vsub.s32 4, %v1556
          %v1558 = vrot.slane %v1517, %v1557
          %v1559 = vlaneseq
          %v1560 = vshrl.u32 %v1559, 7
          %v1561 = vsub.s32 0, %v1560
          %v1562 = vrot.slane %v1518, %v1561
          %v1563 = vlaneseq
          %v1564 = vshrl.u32 %v1563, 7
          %v1565 = vsub.s32 4, %v1564
          %v1566 = vrot.slane %v1518, %v1565
          %v1575 = vlaneseq
          %v1576 = vshrl.u32 %v1575, 7
          %v1577 = vsub.s32 0, %v1576
          %v1578 = vrot.slane %v1538, %v1577
          %v1579 = vlaneseq
          %v1580 = vshrl.u32 %v1579, 7
          %v1581 = vsub.s32 0, %v1580
          %v1582 = vrot.slane %v1542, %v1581
          %v1583 = vlaneseq
          %v1584 = vshrl.u32 %v1583, 7
          %v1585 = vsub.s32 0, %v1584
          %v1586 = vrot.slane %v1546, %v1585
          %v1587 = vlaneseq
          %v1588 = vshrl.u32 %v1587, 7
          %v1589 = vsub.s32 0, %v1588
          %v1590 = vrot.slane %v1550, %v1589
          %v1591 = vlaneseq
          %v1592 = vshrl.u32 %v1591, 7
          %v1593 = vsub.s32 0, %v1592
          %v1594 = vrot.slane %v1554, %v1593
          %v1595 = vlaneseq
          %v1596 = vshrl.u32 %v1595, 7
          %v1597 = vsub.s32 0, %v1596
          %v1598 = vrot.slane %v1558, %v1597
          %v1599 = vlaneseq
          %v1600 = vshrl.u32 %v1599, 7
          %v1601 = vsub.s32 0, %v1600
          %v1602 = vrot.slane %v1562, %v1601
          %v1603 = vlaneseq
          %v1604 = vshrl.u32 %v1603, 7
          %v1605 = vsub.s32 0, %v1604
          %v1606 = vrot.slane %v1566, %v1605
          %v1607 = vmul.f32 %v1523, %v1578
          %v1608 = vmul.f32 %v1524, %v1582
          %v1609 = vmul.f32 %v1525, %v1586
          %v1610 = vmul.f32 %v1526, %v1590
          %v1611 = vmul.f32 %v1527, %v1594
          %v1612 = vmul.f32 %v1528, %v1598
          %v1613 = vmul.f32 %v1529, %v1602
          %v1614 = vmul.f32 %v1530, %v1606
          %v1623 = vrot.slane %v1607, 4
          %v1624 = vrot.slane %v1608, 4
          %v1625 = vrot.slane %v1609, 4
          %v1626 = vrot.slane %v1610, 4
          %v1627 = vrot.slane %v1611, 4
          %v1628 = vrot.slane %v1612, 4
          %v1629 = vrot.slane %v1613, 4
          %v1630 = vrot.slane %v1614, 4
          %v1639 = vadd.f32 %v1491, %v1623
          %v1640 = vadd.f32 %v1492, %v1624
          %v1641 = vadd.f32 %v1493, %v1625
          %v1642 = vadd.f32 %v1494, %v1626
          %v1643 = vadd.f32 %v1495, %v1627
          %v1644 = vadd.f32 %v1496, %v1628
          %v1645 = vadd.f32 %v1497, %v1629
          %v1646 = vadd.f32 %v1498, %v1630
          %v1647 = vrot.slane %v1359, 5
          %v1648 = vrot.slane %v1647, 4
          %v1649 = vrot.slane %v1360, 5
          %v1650 = vrot.slane %v1649, 4
          %v1651 = vrot.slane %v1361, 5
          %v1652 = vrot.slane %v1651, 4
          %v1653 = vrot.slane %v1362, 5
          %v1654 = vrot.slane %v1653, 4
          %v1659 = vmul.f32 %v1363, %v1648
          %v1660 = vmul.f32 %v1364, %v1650
          %v1661 = vmul.f32 %v1365, %v1652
          %v1662 = vmul.f32 %v1366, %v1654
          %v1663 = vmul.f32 %v1659, %v1388
          %v1664 = vmul.f32 %v1660, %v1390
          %v1665 = vmul.f32 %v1661, %v1392
          %v1666 = vmul.f32 %v1662, %v1394
          %v1667 = vld [vmem:[%s354 + $0x500] sm:$0x33]
          %v1668 = vld [vmem:[%s354 + $0x508] sm:$0x33]
          %v1669 = vld [vmem:[%s354 + $0x510] sm:$0x33]
          %v1670 = vld [vmem:[%s354 + $0x518] sm:$0x33]
          %v1671 = vunpack.c.l.bf16 %v1667
          %v1672 = vunpack.c.h.bf16 %v1667
          %v1673 = vunpack.c.l.bf16 %v1668
          %v1674 = vunpack.c.h.bf16 %v1668
          %v1675 = vunpack.c.l.bf16 %v1669
          %v1676 = vunpack.c.h.bf16 %v1669
          %v1677 = vunpack.c.l.bf16 %v1670
          %v1678 = vunpack.c.h.bf16 %v1670
          %v1683 = vlaneseq
          %v1684 = vshrl.u32 %v1683, 7
          %v1685 = vsub.s32 0, %v1684
          %v1686 = vrot.slane %v1663, %v1685
          %v1687 = vlaneseq
          %v1688 = vshrl.u32 %v1687, 7
          %v1689 = vsub.s32 4, %v1688
          %v1690 = vrot.slane %v1663, %v1689
          %v1691 = vlaneseq
          %v1692 = vshrl.u32 %v1691, 7
          %v1693 = vsub.s32 0, %v1692
          %v1694 = vrot.slane %v1664, %v1693
          %v1695 = vlaneseq
          %v1696 = vshrl.u32 %v1695, 7
          %v1697 = vsub.s32 4, %v1696
          %v1698 = vrot.slane %v1664, %v1697
          %v1699 = vlaneseq
          %v1700 = vshrl.u32 %v1699, 7
          %v1701 = vsub.s32 0, %v1700
          %v1702 = vrot.slane %v1665, %v1701
          %v1703 = vlaneseq
          %v1704 = vshrl.u32 %v1703, 7
          %v1705 = vsub.s32 4, %v1704
          %v1706 = vrot.slane %v1665, %v1705
          %v1707 = vlaneseq
          %v1708 = vshrl.u32 %v1707, 7
          %v1709 = vsub.s32 0, %v1708
          %v1710 = vrot.slane %v1666, %v1709
          %v1711 = vlaneseq
          %v1712 = vshrl.u32 %v1711, 7
          %v1713 = vsub.s32 4, %v1712
          %v1714 = vrot.slane %v1666, %v1713
          %v1723 = vlaneseq
          %v1724 = vshrl.u32 %v1723, 7
          %v1725 = vsub.s32 0, %v1724
          %v1726 = vrot.slane %v1686, %v1725
          %v1727 = vlaneseq
          %v1728 = vshrl.u32 %v1727, 7
          %v1729 = vsub.s32 0, %v1728
          %v1730 = vrot.slane %v1690, %v1729
          %v1731 = vlaneseq
          %v1732 = vshrl.u32 %v1731, 7
          %v1733 = vsub.s32 0, %v1732
          %v1734 = vrot.slane %v1694, %v1733
          %v1735 = vlaneseq
          %v1736 = vshrl.u32 %v1735, 7
          %v1737 = vsub.s32 0, %v1736
          %v1738 = vrot.slane %v1698, %v1737
          %v1739 = vlaneseq
          %v1740 = vshrl.u32 %v1739, 7
          %v1741 = vsub.s32 0, %v1740
          %v1742 = vrot.slane %v1702, %v1741
          %v1743 = vlaneseq
          %v1744 = vshrl.u32 %v1743, 7
          %v1745 = vsub.s32 0, %v1744
          %v1746 = vrot.slane %v1706, %v1745
          %v1747 = vlaneseq
          %v1748 = vshrl.u32 %v1747, 7
          %v1749 = vsub.s32 0, %v1748
          %v1750 = vrot.slane %v1710, %v1749
          %v1751 = vlaneseq
          %v1752 = vshrl.u32 %v1751, 7
          %v1753 = vsub.s32 0, %v1752
          %v1754 = vrot.slane %v1714, %v1753
          %v1755 = vmul.f32 %v1671, %v1726
          %v1756 = vmul.f32 %v1672, %v1730
          %v1757 = vmul.f32 %v1673, %v1734
          %v1758 = vmul.f32 %v1674, %v1738
          %v1759 = vmul.f32 %v1675, %v1742
          %v1760 = vmul.f32 %v1676, %v1746
          %v1761 = vmul.f32 %v1677, %v1750
          %v1762 = vmul.f32 %v1678, %v1754
          %v1763 = vadd.f32 %v1639, %v1755
          %v1764 = vadd.f32 %v1640, %v1756
          %v1765 = vadd.f32 %v1641, %v1757
          %v1766 = vadd.f32 %v1642, %v1758
          %v1767 = vadd.f32 %v1643, %v1759
          %v1768 = vadd.f32 %v1644, %v1760
          %v1769 = vadd.f32 %v1645, %v1761
          %v1770 = vadd.f32 %v1646, %v1762
          %v1771 = vmul.f32 %v1659, %v1504
          %v1772 = vmul.f32 %v1660, %v1506
          %v1773 = vmul.f32 %v1661, %v1508
          %v1774 = vmul.f32 %v1662, %v1510
          %v1775 = vld [vmem:[%s354 + $0x500] sm:$0xcc]
          %v1776 = vld [vmem:[%s354 + $0x508] sm:$0xcc]
          %v1777 = vld [vmem:[%s354 + $0x510] sm:$0xcc]
          %v1778 = vld [vmem:[%s354 + $0x518] sm:$0xcc]
          %v1779 = vunpack.c.l.bf16 %v1775
          %v1780 = vunpack.c.h.bf16 %v1775
          %v1781 = vunpack.c.l.bf16 %v1776
          %v1782 = vunpack.c.h.bf16 %v1776
          %v1783 = vunpack.c.l.bf16 %v1777
          %v1784 = vunpack.c.h.bf16 %v1777
          %v1785 = vunpack.c.l.bf16 %v1778
          %v1786 = vunpack.c.h.bf16 %v1778
          %v1791 = vlaneseq
          %v1792 = vshrl.u32 %v1791, 7
          %v1793 = vsub.s32 0, %v1792
          %v1794 = vrot.slane %v1771, %v1793
          %v1795 = vlaneseq
          %v1796 = vshrl.u32 %v1795, 7
          %v1797 = vsub.s32 4, %v1796
          %v1798 = vrot.slane %v1771, %v1797
          %v1799 = vlaneseq
          %v1800 = vshrl.u32 %v1799, 7
          %v1801 = vsub.s32 0, %v1800
          %v1802 = vrot.slane %v1772, %v1801
          %v1803 = vlaneseq
          %v1804 = vshrl.u32 %v1803, 7
          %v1805 = vsub.s32 4, %v1804
          %v1806 = vrot.slane %v1772, %v1805
          %v1807 = vlaneseq
          %v1808 = vshrl.u32 %v1807, 7
          %v1809 = vsub.s32 0, %v1808
          %v1810 = vrot.slane %v1773, %v1809
          %v1811 = vlaneseq
          %v1812 = vshrl.u32 %v1811, 7
          %v1813 = vsub.s32 4, %v1812
          %v1814 = vrot.slane %v1773, %v1813
          %v1815 = vlaneseq
          %v1816 = vshrl.u32 %v1815, 7
          %v1817 = vsub.s32 0, %v1816
          %v1818 = vrot.slane %v1774, %v1817
          %v1819 = vlaneseq
          %v1820 = vshrl.u32 %v1819, 7
          %v1821 = vsub.s32 4, %v1820
          %v1822 = vrot.slane %v1774, %v1821
          %v1831 = vlaneseq
          %v1832 = vshrl.u32 %v1831, 7
          %v1833 = vsub.s32 0, %v1832
          %v1834 = vrot.slane %v1794, %v1833
          %v1835 = vlaneseq
          %v1836 = vshrl.u32 %v1835, 7
          %v1837 = vsub.s32 0, %v1836
          %v1838 = vrot.slane %v1798, %v1837
          %v1839 = vlaneseq
          %v1840 = vshrl.u32 %v1839, 7
          %v1841 = vsub.s32 0, %v1840
          %v1842 = vrot.slane %v1802, %v1841
          %v1843 = vlaneseq
          %v1844 = vshrl.u32 %v1843, 7
          %v1845 = vsub.s32 0, %v1844
          %v1846 = vrot.slane %v1806, %v1845
          %v1847 = vlaneseq
          %v1848 = vshrl.u32 %v1847, 7
          %v1849 = vsub.s32 0, %v1848
          %v1850 = vrot.slane %v1810, %v1849
          %v1851 = vlaneseq
          %v1852 = vshrl.u32 %v1851, 7
          %v1853 = vsub.s32 0, %v1852
          %v1854 = vrot.slane %v1814, %v1853
          %v1855 = vlaneseq
          %v1856 = vshrl.u32 %v1855, 7
          %v1857 = vsub.s32 0, %v1856
          %v1858 = vrot.slane %v1818, %v1857
          %v1859 = vlaneseq
          %v1860 = vshrl.u32 %v1859, 7
          %v1861 = vsub.s32 0, %v1860
          %v1862 = vrot.slane %v1822, %v1861
          %v1863 = vmul.f32 %v1779, %v1834
          %v1864 = vmul.f32 %v1780, %v1838
          %v1865 = vmul.f32 %v1781, %v1842
          %v1866 = vmul.f32 %v1782, %v1846
          %v1867 = vmul.f32 %v1783, %v1850
          %v1868 = vmul.f32 %v1784, %v1854
          %v1869 = vmul.f32 %v1785, %v1858
          %v1870 = vmul.f32 %v1786, %v1862
          %v1879 = vrot.slane %v1863, 4
          %v1880 = vrot.slane %v1864, 4
          %v1881 = vrot.slane %v1865, 4
          %v1882 = vrot.slane %v1866, 4
          %v1883 = vrot.slane %v1867, 4
          %v1884 = vrot.slane %v1868, 4
          %v1885 = vrot.slane %v1869, 4
          %v1886 = vrot.slane %v1870, 4
          %v1895 = vadd.f32 %v1763, %v1879
          %v1896 = vadd.f32 %v1764, %v1880
          %v1897 = vadd.f32 %v1765, %v1881
          %v1898 = vadd.f32 %v1766, %v1882
          %v1899 = vadd.f32 %v1767, %v1883
          %v1900 = vadd.f32 %v1768, %v1884
          %v1901 = vadd.f32 %v1769, %v1885
          %v1902 = vadd.f32 %v1770, %v1886
          %v1903 = vmul.f32 %v1359, %v1372
          %v1904 = vmul.f32 %v1360, %v1374
          %v1905 = vmul.f32 %v1361, %v1376
          %v1906 = vmul.f32 %v1362, %v1378
          %v1907 = vmul.f32 %v1903, %v1388
          %v1908 = vmul.f32 %v1904, %v1390
          %v1909 = vmul.f32 %v1905, %v1392
          %v1910 = vmul.f32 %v1906, %v1394
          %v1911 = vld [vmem:[%s354 + $0x600] sm:$0x33]
          %v1912 = vld [vmem:[%s354 + $0x608] sm:$0x33]
          %v1913 = vld [vmem:[%s354 + $0x610] sm:$0x33]
          %v1914 = vld [vmem:[%s354 + $0x618] sm:$0x33]
          %v1915 = vunpack.c.l.bf16 %v1911
          %v1916 = vunpack.c.h.bf16 %v1911
          %v1917 = vunpack.c.l.bf16 %v1912
          %v1918 = vunpack.c.h.bf16 %v1912
          %v1919 = vunpack.c.l.bf16 %v1913
          %v1920 = vunpack.c.h.bf16 %v1913
          %v1921 = vunpack.c.l.bf16 %v1914
          %v1922 = vunpack.c.h.bf16 %v1914
          %v1927 = vlaneseq
          %v1928 = vshrl.u32 %v1927, 7
          %v1929 = vsub.s32 0, %v1928
          %v1930 = vrot.slane %v1907, %v1929
          %v1931 = vlaneseq
          %v1932 = vshrl.u32 %v1931, 7
          %v1933 = vsub.s32 4, %v1932
          %v1934 = vrot.slane %v1907, %v1933
          %v1935 = vlaneseq
          %v1936 = vshrl.u32 %v1935, 7
          %v1937 = vsub.s32 0, %v1936
          %v1938 = vrot.slane %v1908, %v1937
          %v1939 = vlaneseq
          %v1940 = vshrl.u32 %v1939, 7
          %v1941 = vsub.s32 4, %v1940
          %v1942 = vrot.slane %v1908, %v1941
          %v1943 = vlaneseq
          %v1944 = vshrl.u32 %v1943, 7
          %v1945 = vsub.s32 0, %v1944
          %v1946 = vrot.slane %v1909, %v1945
          %v1947 = vlaneseq
          %v1948 = vshrl.u32 %v1947, 7
          %v1949 = vsub.s32 4, %v1948
          %v1950 = vrot.slane %v1909, %v1949
          %v1951 = vlaneseq
          %v1952 = vshrl.u32 %v1951, 7
          %v1953 = vsub.s32 0, %v1952
          %v1954 = vrot.slane %v1910, %v1953
          %v1955 = vlaneseq
          %v1956 = vshrl.u32 %v1955, 7
          %v1957 = vsub.s32 4, %v1956
          %v1958 = vrot.slane %v1910, %v1957
          %v1967 = vlaneseq
          %v1968 = vshrl.u32 %v1967, 7
          %v1969 = vsub.s32 0, %v1968
          %v1970 = vrot.slane %v1930, %v1969
          %v1971 = vlaneseq
          %v1972 = vshrl.u32 %v1971, 7
          %v1973 = vsub.s32 0, %v1972
          %v1974 = vrot.slane %v1934, %v1973
          %v1975 = vlaneseq
          %v1976 = vshrl.u32 %v1975, 7
          %v1977 = vsub.s32 0, %v1976
          %v1978 = vrot.slane %v1938, %v1977
          %v1979 = vlaneseq
          %v1980 = vshrl.u32 %v1979, 7
          %v1981 = vsub.s32 0, %v1980
          %v1982 = vrot.slane %v1942, %v1981
          %v1983 = vlaneseq
          %v1984 = vshrl.u32 %v1983, 7
          %v1985 = vsub.s32 0, %v1984
          %v1986 = vrot.slane %v1946, %v1985
          %v1987 = vlaneseq
          %v1988 = vshrl.u32 %v1987, 7
          %v1989 = vsub.s32 0, %v1988
          %v1990 = vrot.slane %v1950, %v1989
          %v1991 = vlaneseq
          %v1992 = vshrl.u32 %v1991, 7
          %v1993 = vsub.s32 0, %v1992
          %v1994 = vrot.slane %v1954, %v1993
          %v1995 = vlaneseq
          %v1996 = vshrl.u32 %v1995, 7
          %v1997 = vsub.s32 0, %v1996
          %v1998 = vrot.slane %v1958, %v1997
          %v1999 = vmul.f32 %v1915, %v1970
          %v2000 = vmul.f32 %v1916, %v1974
          %v2001 = vmul.f32 %v1917, %v1978
          %v2002 = vmul.f32 %v1918, %v1982
          %v2003 = vmul.f32 %v1919, %v1986
          %v2004 = vmul.f32 %v1920, %v1990
          %v2005 = vmul.f32 %v1921, %v1994
          %v2006 = vmul.f32 %v1922, %v1998
          %v2007 = vadd.f32 %v1895, %v1999
          %v2008 = vadd.f32 %v1896, %v2000
          %v2009 = vadd.f32 %v1897, %v2001
          %v2010 = vadd.f32 %v1898, %v2002
          %v2011 = vadd.f32 %v1899, %v2003
          %v2012 = vadd.f32 %v1900, %v2004
          %v2013 = vadd.f32 %v1901, %v2005
          %v2014 = vadd.f32 %v1902, %v2006
          %v2015 = vmul.f32 %v1903, %v1504
          %v2016 = vmul.f32 %v1904, %v1506
          %v2017 = vmul.f32 %v1905, %v1508
          %v2018 = vmul.f32 %v1906, %v1510
          %v2019 = vld [vmem:[%s354 + $0x600] sm:$0xcc]
          %v2020 = vld [vmem:[%s354 + $0x608] sm:$0xcc]
          %v2021 = vld [vmem:[%s354 + $0x610] sm:$0xcc]
          %v2022 = vld [vmem:[%s354 + $0x618] sm:$0xcc]
          %v2023 = vunpack.c.l.bf16 %v2019
          %v2024 = vunpack.c.h.bf16 %v2019
          %v2025 = vunpack.c.l.bf16 %v2020
          %v2026 = vunpack.c.h.bf16 %v2020
          %v2027 = vunpack.c.l.bf16 %v2021
          %v2028 = vunpack.c.h.bf16 %v2021
          %v2029 = vunpack.c.l.bf16 %v2022
          %v2030 = vunpack.c.h.bf16 %v2022
          %v2035 = vlaneseq
          %v2036 = vshrl.u32 %v2035, 7
          %v2037 = vsub.s32 0, %v2036
          %v2038 = vrot.slane %v2015, %v2037
          %v2039 = vlaneseq
          %v2040 = vshrl.u32 %v2039, 7
          %v2041 = vsub.s32 4, %v2040
          %v2042 = vrot.slane %v2015, %v2041
          %v2043 = vlaneseq
          %v2044 = vshrl.u32 %v2043, 7
          %v2045 = vsub.s32 0, %v2044
          %v2046 = vrot.slane %v2016, %v2045
          %v2047 = vlaneseq
          %v2048 = vshrl.u32 %v2047, 7
          %v2049 = vsub.s32 4, %v2048
          %v2050 = vrot.slane %v2016, %v2049
          %v2051 = vlaneseq
          %v2052 = vshrl.u32 %v2051, 7
          %v2053 = vsub.s32 0, %v2052
          %v2054 = vrot.slane %v2017, %v2053
          %v2055 = vlaneseq
          %v2056 = vshrl.u32 %v2055, 7
          %v2057 = vsub.s32 4, %v2056
          %v2058 = vrot.slane %v2017, %v2057
          %v2059 = vlaneseq
          %v2060 = vshrl.u32 %v2059, 7
          %v2061 = vsub.s32 0, %v2060
          %v2062 = vrot.slane %v2018, %v2061
          %v2063 = vlaneseq
          %v2064 = vshrl.u32 %v2063, 7
          %v2065 = vsub.s32 4, %v2064
          %v2066 = vrot.slane %v2018, %v2065
          %v2075 = vlaneseq
          %v2076 = vshrl.u32 %v2075, 7
          %v2077 = vsub.s32 0, %v2076
          %v2078 = vrot.slane %v2038, %v2077
          %v2079 = vlaneseq
          %v2080 = vshrl.u32 %v2079, 7
          %v2081 = vsub.s32 0, %v2080
          %v2082 = vrot.slane %v2042, %v2081
          %v2083 = vlaneseq
          %v2084 = vshrl.u32 %v2083, 7
          %v2085 = vsub.s32 0, %v2084
          %v2086 = vrot.slane %v2046, %v2085
          %v2087 = vlaneseq
          %v2088 = vshrl.u32 %v2087, 7
          %v2089 = vsub.s32 0, %v2088
          %v2090 = vrot.slane %v2050, %v2089
          %v2091 = vlaneseq
          %v2092 = vshrl.u32 %v2091, 7
          %v2093 = vsub.s32 0, %v2092
          %v2094 = vrot.slane %v2054, %v2093
          %v2095 = vlaneseq
          %v2096 = vshrl.u32 %v2095, 7
          %v2097 = vsub.s32 0, %v2096
          %v2098 = vrot.slane %v2058, %v2097
          %v2099 = vlaneseq
          %v2100 = vshrl.u32 %v2099, 7
          %v2101 = vsub.s32 0, %v2100
          %v2102 = vrot.slane %v2062, %v2101
          %v2103 = vlaneseq
          %v2104 = vshrl.u32 %v2103, 7
          %v2105 = vsub.s32 0, %v2104
          %v2106 = vrot.slane %v2066, %v2105
          %v2107 = vmul.f32 %v2023, %v2078
          %v2108 = vmul.f32 %v2024, %v2082
          %v2109 = vmul.f32 %v2025, %v2086
          %v2110 = vmul.f32 %v2026, %v2090
          %v2111 = vmul.f32 %v2027, %v2094
          %v2112 = vmul.f32 %v2028, %v2098
          %v2113 = vmul.f32 %v2029, %v2102
          %v2114 = vmul.f32 %v2030, %v2106
          %v2123 = vrot.slane %v2107, 4
          %v2124 = vrot.slane %v2108, 4
          %v2125 = vrot.slane %v2109, 4
          %v2126 = vrot.slane %v2110, 4
          %v2127 = vrot.slane %v2111, 4
          %v2128 = vrot.slane %v2112, 4
          %v2129 = vrot.slane %v2113, 4
          %v2130 = vrot.slane %v2114, 4
          %v2139 = vadd.f32 %v2007, %v2123
          %v2140 = vadd.f32 %v2008, %v2124
          %v2141 = vadd.f32 %v2009, %v2125
          %v2142 = vadd.f32 %v2010, %v2126
          %v2143 = vadd.f32 %v2011, %v2127
          %v2144 = vadd.f32 %v2012, %v2128
          %v2145 = vadd.f32 %v2013, %v2129
          %v2146 = vadd.f32 %v2014, %v2130
          %v2147 = vmul.f32 %v1359, %v1648
          %v2148 = vmul.f32 %v1360, %v1650
          %v2149 = vmul.f32 %v1361, %v1652
          %v2150 = vmul.f32 %v1362, %v1654
          %v2151 = vmul.f32 %v2147, %v1388
          %v2152 = vmul.f32 %v2148, %v1390
          %v2153 = vmul.f32 %v2149, %v1392
          %v2154 = vmul.f32 %v2150, %v1394
          %v2155 = vld [vmem:[%s354 + $0x700] sm:$0x33]
          %v2156 = vld [vmem:[%s354 + $0x708] sm:$0x33]
          %v2157 = vld [vmem:[%s354 + $0x710] sm:$0x33]
          %v2158 = vld [vmem:[%s354 + $0x718] sm:$0x33]
          %v2159 = vunpack.c.l.bf16 %v2155
          %v2160 = vunpack.c.h.bf16 %v2155
          %v2161 = vunpack.c.l.bf16 %v2156
          %v2162 = vunpack.c.h.bf16 %v2156
          %v2163 = vunpack.c.l.bf16 %v2157
          %v2164 = vunpack.c.h.bf16 %v2157
          %v2165 = vunpack.c.l.bf16 %v2158
          %v2166 = vunpack.c.h.bf16 %v2158
          %v2171 = vlaneseq
          %v2172 = vshrl.u32 %v2171, 7
          %v2173 = vsub.s32 0, %v2172
          %v2174 = vrot.slane %v2151, %v2173
          %v2175 = vlaneseq
          %v2176 = vshrl.u32 %v2175, 7
          %v2177 = vsub.s32 4, %v2176
          %v2178 = vrot.slane %v2151, %v2177
          %v2179 = vlaneseq
          %v2180 = vshrl.u32 %v2179, 7
          %v2181 = vsub.s32 0, %v2180
          %v2182 = vrot.slane %v2152, %v2181
          %v2183 = vlaneseq
          %v2184 = vshrl.u32 %v2183, 7
          %v2185 = vsub.s32 4, %v2184
          %v2186 = vrot.slane %v2152, %v2185
          %v2187 = vlaneseq
          %v2188 = vshrl.u32 %v2187, 7
          %v2189 = vsub.s32 0, %v2188
          %v2190 = vrot.slane %v2153, %v2189
          %v2191 = vlaneseq
          %v2192 = vshrl.u32 %v2191, 7
          %v2193 = vsub.s32 4, %v2192
          %v2194 = vrot.slane %v2153, %v2193
          %v2195 = vlaneseq
          %v2196 = vshrl.u32 %v2195, 7
          %v2197 = vsub.s32 0, %v2196
          %v2198 = vrot.slane %v2154, %v2197
          %v2199 = vlaneseq
          %v2200 = vshrl.u32 %v2199, 7
          %v2201 = vsub.s32 4, %v2200
          %v2202 = vrot.slane %v2154, %v2201
          %v2211 = vlaneseq
          %v2212 = vshrl.u32 %v2211, 7
          %v2213 = vsub.s32 0, %v2212
          %v2214 = vrot.slane %v2174, %v2213
          %v2215 = vlaneseq
          %v2216 = vshrl.u32 %v2215, 7
          %v2217 = vsub.s32 0, %v2216
          %v2218 = vrot.slane %v2178, %v2217
          %v2219 = vlaneseq
          %v2220 = vshrl.u32 %v2219, 7
          %v2221 = vsub.s32 0, %v2220
          %v2222 = vrot.slane %v2182, %v2221
          %v2223 = vlaneseq
          %v2224 = vshrl.u32 %v2223, 7
          %v2225 = vsub.s32 0, %v2224
          %v2226 = vrot.slane %v2186, %v2225
          %v2227 = vlaneseq
          %v2228 = vshrl.u32 %v2227, 7
          %v2229 = vsub.s32 0, %v2228
          %v2230 = vrot.slane %v2190, %v2229
          %v2231 = vlaneseq
          %v2232 = vshrl.u32 %v2231, 7
          %v2233 = vsub.s32 0, %v2232
          %v2234 = vrot.slane %v2194, %v2233
          %v2235 = vlaneseq
          %v2236 = vshrl.u32 %v2235, 7
          %v2237 = vsub.s32 0, %v2236
          %v2238 = vrot.slane %v2198, %v2237
          %v2239 = vlaneseq
          %v2240 = vshrl.u32 %v2239, 7
          %v2241 = vsub.s32 0, %v2240
          %v2242 = vrot.slane %v2202, %v2241
          %v2243 = vmul.f32 %v2159, %v2214
          %v2244 = vmul.f32 %v2160, %v2218
          %v2245 = vmul.f32 %v2161, %v2222
          %v2246 = vmul.f32 %v2162, %v2226
          %v2247 = vmul.f32 %v2163, %v2230
          %v2248 = vmul.f32 %v2164, %v2234
          %v2249 = vmul.f32 %v2165, %v2238
          %v2250 = vmul.f32 %v2166, %v2242
          %v2251 = vadd.f32 %v2139, %v2243
          %v2252 = vadd.f32 %v2140, %v2244
          %v2253 = vadd.f32 %v2141, %v2245
          %v2254 = vadd.f32 %v2142, %v2246
          %v2255 = vadd.f32 %v2143, %v2247
          %v2256 = vadd.f32 %v2144, %v2248
          %v2257 = vadd.f32 %v2145, %v2249
          %v2258 = vadd.f32 %v2146, %v2250
          %v2259 = vmul.f32 %v2147, %v1504
          %v2260 = vmul.f32 %v2148, %v1506
          %v2261 = vmul.f32 %v2149, %v1508
          %v2262 = vmul.f32 %v2150, %v1510
          %v2263 = vld [vmem:[%s354 + $0x700] sm:$0xcc]
          %v2264 = vld [vmem:[%s354 + $0x708] sm:$0xcc]
          %v2265 = vld [vmem:[%s354 + $0x710] sm:$0xcc]
          %v2266 = vld [vmem:[%s354 + $0x718] sm:$0xcc]
          %v2267 = vunpack.c.l.bf16 %v2263
          %v2268 = vunpack.c.h.bf16 %v2263
          %v2269 = vunpack.c.l.bf16 %v2264
          %v2270 = vunpack.c.h.bf16 %v2264
          %v2271 = vunpack.c.l.bf16 %v2265
          %v2272 = vunpack.c.h.bf16 %v2265
          %v2273 = vunpack.c.l.bf16 %v2266
          %v2274 = vunpack.c.h.bf16 %v2266
          %v2279 = vlaneseq
          %v2280 = vshrl.u32 %v2279, 7
          %v2281 = vsub.s32 0, %v2280
          %v2282 = vrot.slane %v2259, %v2281
          %v2283 = vlaneseq
          %v2284 = vshrl.u32 %v2283, 7
          %v2285 = vsub.s32 4, %v2284
          %v2286 = vrot.slane %v2259, %v2285
          %v2287 = vlaneseq
          %v2288 = vshrl.u32 %v2287, 7
          %v2289 = vsub.s32 0, %v2288
          %v2290 = vrot.slane %v2260, %v2289
          %v2291 = vlaneseq
          %v2292 = vshrl.u32 %v2291, 7
          %v2293 = vsub.s32 4, %v2292
          %v2294 = vrot.slane %v2260, %v2293
          %v2295 = vlaneseq
          %v2296 = vshrl.u32 %v2295, 7
          %v2297 = vsub.s32 0, %v2296
          %v2298 = vrot.slane %v2261, %v2297
          %v2299 = vlaneseq
          %v2300 = vshrl.u32 %v2299, 7
          %v2301 = vsub.s32 4, %v2300
          %v2302 = vrot.slane %v2261, %v2301
          %v2303 = vlaneseq
          %v2304 = vshrl.u32 %v2303, 7
          %v2305 = vsub.s32 0, %v2304
          %v2306 = vrot.slane %v2262, %v2305
          %v2307 = vlaneseq
          %v2308 = vshrl.u32 %v2307, 7
          %v2309 = vsub.s32 4, %v2308
          %v2310 = vrot.slane %v2262, %v2309
          %v2319 = vlaneseq
          %v2320 = vshrl.u32 %v2319, 7
          %v2321 = vsub.s32 0, %v2320
          %v2322 = vrot.slane %v2282, %v2321
          %v2323 = vlaneseq
          %v2324 = vshrl.u32 %v2323, 7
          %v2325 = vsub.s32 0, %v2324
          %v2326 = vrot.slane %v2286, %v2325
          %v2327 = vlaneseq
          %v2328 = vshrl.u32 %v2327, 7
          %v2329 = vsub.s32 0, %v2328
          %v2330 = vrot.slane %v2290, %v2329
          %v2331 = vlaneseq
          %v2332 = vshrl.u32 %v2331, 7
          %v2333 = vsub.s32 0, %v2332
          %v2334 = vrot.slane %v2294, %v2333
          %v2335 = vlaneseq
          %v2336 = vshrl.u32 %v2335, 7
          %v2337 = vsub.s32 0, %v2336
          %v2338 = vrot.slane %v2298, %v2337
          %v2339 = vlaneseq
          %v2340 = vshrl.u32 %v2339, 7
          %v2341 = vsub.s32 0, %v2340
          %v2342 = vrot.slane %v2302, %v2341
          %v2343 = vlaneseq
          %v2344 = vshrl.u32 %v2343, 7
          %v2345 = vsub.s32 0, %v2344
          %v2346 = vrot.slane %v2306, %v2345
          %v2347 = vlaneseq
          %v2348 = vshrl.u32 %v2347, 7
          %v2349 = vsub.s32 0, %v2348
          %v2350 = vrot.slane %v2310, %v2349
          %v2351 = vmul.f32 %v2267, %v2322
          %v2352 = vmul.f32 %v2268, %v2326
          %v2353 = vmul.f32 %v2269, %v2330
          %v2354 = vmul.f32 %v2270, %v2334
          %v2355 = vmul.f32 %v2271, %v2338
          %v2356 = vmul.f32 %v2272, %v2342
          %v2357 = vmul.f32 %v2273, %v2346
          %v2358 = vmul.f32 %v2274, %v2350
          %v2367 = vrot.slane %v2351, 4
          %v2368 = vrot.slane %v2352, 4
          %v2369 = vrot.slane %v2353, 4
          %v2370 = vrot.slane %v2354, 4
          %v2371 = vrot.slane %v2355, 4
          %v2372 = vrot.slane %v2356, 4
          %v2373 = vrot.slane %v2357, 4
          %v2374 = vrot.slane %v2358, 4
          %v2383 = vadd.f32 %v2251, %v2367
          %v2384 = vadd.f32 %v2252, %v2368
          %v2385 = vadd.f32 %v2253, %v2369
          %v2386 = vadd.f32 %v2254, %v2370
          %v2387 = vadd.f32 %v2255, %v2371
          %v2388 = vadd.f32 %v2256, %v2372
          %v2389 = vadd.f32 %v2257, %v2373
          %v2390 = vadd.f32 %v2258, %v2374
          %v2399 = vrot.slane %v2383, 4
          %v2400 = vrot.slane %v2384, 4
          %v2401 = vrot.slane %v2385, 4
          %v2402 = vrot.slane %v2386, 4
          %v2403 = vrot.slane %v2387, 4
          %v2404 = vrot.slane %v2388, 4
          %v2405 = vrot.slane %v2389, 4
          %v2406 = vrot.slane %v2390, 4
          %vm2415 = vcmask 1043456
          %v2416 = vsel %vm2415, %v1335, %v2399
          %v2417 = vsel %vm2415, %v1336, %v2400
          %v2418 = vsel %vm2415, %v1337, %v2401
          %v2419 = vsel %vm2415, %v1338, %v2402
          %v2420 = vsel %vm2415, %v1339, %v2403
          %v2421 = vsel %vm2415, %v1340, %v2404
          %v2422 = vsel %vm2415, %v1341, %v2405
          %v2423 = vsel %vm2415, %v1342, %v2406
          %v2424 = vpack.c.bf16 %v2416, %v2416
          %v2425 = vpack.c.bf16 %v2417, %v2417
          %v2426 = vpack.c.bf16 %v2418, %v2418
          %v2427 = vpack.c.bf16 %v2419, %v2419
          %v2428 = vpack.c.bf16 %v2420, %v2420
          %v2429 = vpack.c.bf16 %v2421, %v2421
          %v2430 = vpack.c.bf16 %v2422, %v2422
          %v2431 = vpack.c.bf16 %v2423, %v2423
          %v2440 = vunpack.c.l.b16 %v2424
          %v2441 = vunpack.c.l.b16 %v2425
          %v2442 = vunpack.c.l.b16 %v2426
          %v2443 = vunpack.c.l.b16 %v2427
          %v2444 = vunpack.c.l.b16 %v2428
          %v2445 = vunpack.c.l.b16 %v2429
          %v2446 = vunpack.c.l.b16 %v2430
          %v2447 = vunpack.c.l.b16 %v2431
          %v2448 = vpack.c.b16 %v2441, %v2440
          %v2449 = vpack.c.b16 %v2443, %v2442
          %v2450 = vpack.c.b16 %v2445, %v2444
          %v2451 = vpack.c.b16 %v2447, %v2446
          %s2456 = smul.addr %s281, 4
          %s2457 = scalar_lea.vmem %s257, %s2456 [#allocation7]
          %2458 = vst [vmem:[%s2457] sm:$0xff] %v2448
          %2459 = vst [vmem:[%s2457 + $0x8] sm:$0xff] %v2449
          %2460 = vst [vmem:[%s2457 + $0x10] sm:$0xff] %v2450
          %2461 = vst [vmem:[%s2457 + $0x18] sm:$0xff] %v2451
          %2463 = vset.pattern.permute.xlu0 8
          %2464 = vperm.xlu0 %2463, %v269
          %v2465 = vpop.permute.xlu0 %2464
          %2468 = vset.pattern.permute.xlu0 8
          %2469 = vperm.xlu0 %2468, %v270
          %v2470 = vpop.permute.xlu0 %2469
          %2473 = vset.pattern.permute.xlu0 8
          %2474 = vperm.xlu0 %2473, %v271
          %v2475 = vpop.permute.xlu0 %2474
          %2478 = vset.pattern.permute.xlu0 8
          %2479 = vperm.xlu0 %2478, %v272
          %v2480 = vpop.permute.xlu0 %2479
          %vm2482 = vcmask 64512
          %v2483 = vsel %vm2482, %v269, 0
          %v2485 = vsel %vm2482, %v270, 0
          %v2487 = vsel %vm2482, %v271, 0
          %v2489 = vsel %vm2482, %v272, 0
          %2491 = vmatprep.subr.mxu0 %v2417
          %2492 = vmatpush1.msra.mxu0 %v2416
          %2493 = vmatprep.subr.mxu0 0.0
          %2494 = vmatpush1.msra.mxu0 0.0
          %2495 = vmatprep.subr.mxu0 0.0
          %2496 = vmatpush1.msra.mxu0 0.0
          %2497 = vmatprep.subr.mxu0 0.0
          %2498 = vmatpush1.msra.mxu0 0.0
          %2499 = vmatprep.subr.mxu0 0.0
          %2500 = vmatpush1.msra.mxu0 0.0
          %2501 = vmatprep.subr.mxu0 0.0
          %2502 = vmatpush1.msra.mxu0 0.0
          %2503 = vmatprep.subr.mxu0 0.0
          %2504 = vmatpush1.msra.mxu0 0.0
          %2505 = vmatprep.subr.mxu0 0.0
          %2506 = vmatpush1.msra.mxu0 0.0
          %2507 = vmatprep.subr.mxu0 0.0
          %2508 = vmatpush1.msra.mxu0 0.0
          %2509 = vmatprep.subr.mxu0 0.0
          %2510 = vmatpush1.msra.mxu0 0.0
          %2511 = vmatprep.subr.mxu0 0.0
          %2512 = vmatpush1.msra.mxu0 0.0
          %2513 = vmatprep.subr.mxu0 0.0
          %2514 = vmatpush1.msra.mxu0 0.0
          %2515 = vmatprep.subr.mxu0 0.0
          %2516 = vmatpush1.msra.mxu0 0.0
          %2517 = vmatprep.subr.mxu0 0.0
          %2518 = vmatpush1.msra.mxu0 0.0
          %2519 = vmatprep.subr.mxu0 0.0
          %2520 = vmatpush1.msra.mxu0 0.0
          %2521 = vmatprep.subr.mxu0 0.0
          %2522 = vmatpush1.msra.mxu0 0.0
          %2523 = vmatprep.subr.mxu0 0.0
          %2524 = vmatpush1.msra.mxu0 0.0
          %2525 = vmatprep.subr.mxu0 0.0
          %2526 = vmatpush1.msra.mxu0 0.0
          %2527 = vmatprep.subr.mxu0 0.0
          %2528 = vmatpush1.msra.mxu0 0.0
          %2529 = vmatprep.subr.mxu0 0.0
          %2530 = vmatpush1.msra.mxu0 0.0
          %2531 = vmatprep.subr.mxu0 0.0
          %2532 = vmatpush1.msra.mxu0 0.0
          %2533 = vmatprep.subr.mxu0 0.0
          %2534 = vmatpush1.msra.mxu0 0.0
          %2535 = vmatprep.subr.mxu0 0.0
          %2536 = vmatpush1.msra.mxu0 0.0
          %2537 = vmatprep.subr.mxu0 0.0
          %2538 = vmatpush1.msra.mxu0 0.0
          %2539 = vmatprep.subr.mxu0 0.0
          %2540 = vmatpush1.msra.mxu0 0.0
          %2541 = vmatprep.subr.mxu0 0.0
          %2542 = vmatpush1.msra.mxu0 0.0
          %2543 = vmatprep.subr.mxu0 0.0
          %2544 = vmatpush1.msra.mxu0 0.0
          %2545 = vmatprep.subr.mxu0 0.0
          %2546 = vmatpush1.msra.mxu0 0.0
          %2547 = vmatprep.subr.mxu0 0.0
          %2548 = vmatpush1.msra.mxu0 0.0
          %2549 = vmatprep.subr.mxu0 0.0
          %2550 = vmatpush1.msra.mxu0 0.0
          %2551 = vmatprep.subr.mxu0 0.0
          %2552 = vmatpush1.msra.mxu0 0.0
          %2553 = vmatprep.subr.mxu0 0.0
          %2554 = vmatpush1.msra.mxu0 0.0
          %2555 = vmatprep.mubr.f32.mxu0 0.0
          %2556 = vmatmul.mubr.f32.gmra.mrb[0].mxu0 %v2483
          %v2557 = vpop.f32.mrb[0].mxu0
          %v2558 = vadd.f32 %v2465, %v2557
          %v2559 = vpop.f32.mrb[0].mxu0
          %v2560 = vadd.f32 %v2465, %v2559
          %2561 = vmatprep.mubr.f32.mxu0 0.0
          %2562 = vmatmul.mubr.f32.gmra.mrb[0].mxu0 %v2485
          %v2563 = vpop.f32.mrb[0].mxu0
          %v2564 = vadd.f32 %v2470, %v2563
          %v2565 = vpop.f32.mrb[0].mxu0
          %v2566 = vadd.f32 %v2470, %v2565
          %2567 = vmatprep.mubr.f32.mxu0 0.0
          %2568 = vmatmul.mubr.f32.gmra.mrb[0].mxu0 %v2487
          %v2569 = vpop.f32.mrb[0].mxu0
          %v2570 = vadd.f32 %v2475, %v2569
          %v2571 = vpop.f32.mrb[0].mxu0
          %v2572 = vadd.f32 %v2475, %v2571
          %2573 = vmatprep.mubr.f32.mxu0 0.0
          %2574 = vmatmul.mubr.f32.gmra.mrb[0].mxu0 %v2489
          %v2575 = vpop.f32.mrb[0].mxu0
          %v2576 = vadd.f32 %v2480, %v2575
          %v2577 = vpop.f32.mrb[0].mxu0
          %v2578 = vadd.f32 %v2480, %v2577
          %2579 = vdwg.mxu0
          %2580 = vmatprep.subr.mxu0 %v2419
          %2581 = vmatpush1.msra.mxu0 %v2418
          %2582 = vmatprep.subr.mxu0 0.0
          %2583 = vmatpush1.msra.mxu0 0.0
          %2584 = vmatprep.subr.mxu0 0.0
          %2585 = vmatpush1.msra.mxu0 0.0
          %2586 = vmatprep.subr.mxu0 0.0
          %2587 = vmatpush1.msra.mxu0 0.0
          %2588 = vmatprep.subr.mxu0 0.0
          %2589 = vmatpush1.msra.mxu0 0.0
          %2590 = vmatprep.subr.mxu0 0.0
          %2591 = vmatpush1.msra.mxu0 0.0
          %2592 = vmatprep.subr.mxu0 0.0
          %2593 = vmatpush1.msra.mxu0 0.0
          %2594 = vmatprep.subr.mxu0 0.0
          %2595 = vmatpush1.msra.mxu0 0.0
          %2596 = vmatprep.subr.mxu0 0.0
          %2597 = vmatpush1.msra.mxu0 0.0
          %2598 = vmatprep.subr.mxu0 0.0
          %2599 = vmatpush1.msra.mxu0 0.0
          %2600 = vmatprep.subr.mxu0 0.0
          %2601 = vmatpush1.msra.mxu0 0.0
          %2602 = vmatprep.subr.mxu0 0.0
          %2603 = vmatpush1.msra.mxu0 0.0
          %2604 = vmatprep.subr.mxu0 0.0
          %2605 = vmatpush1.msra.mxu0 0.0
          %2606 = vmatprep.subr.mxu0 0.0
          %2607 = vmatpush1.msra.mxu0 0.0
          %2608 = vmatprep.subr.mxu0 0.0
          %2609 = vmatpush1.msra.mxu0 0.0
          %2610 = vmatprep.subr.mxu0 0.0
          %2611 = vmatpush1.msra.mxu0 0.0
          %2612 = vmatprep.subr.mxu0 0.0
          %2613 = vmatpush1.msra.mxu0 0.0
          %2614 = vmatprep.subr.mxu0 0.0
          %2615 = vmatpush1.msra.mxu0 0.0
          %2616 = vmatprep.subr.mxu0 0.0
          %2617 = vmatpush1.msra.mxu0 0.0
          %2618 = vmatprep.subr.mxu0 0.0
          %2619 = vmatpush1.msra.mxu0 0.0
          %2620 = vmatprep.subr.mxu0 0.0
          %2621 = vmatpush1.msra.mxu0 0.0
          %2622 = vmatprep.subr.mxu0 0.0
          %2623 = vmatpush1.msra.mxu0 0.0
          %2624 = vmatprep.subr.mxu0 0.0
          %2625 = vmatpush1.msra.mxu0 0.0
          %2626 = vmatprep.subr.mxu0 0.0
          %2627 = vmatpush1.msra.mxu0 0.0
          %2628 = vmatprep.subr.mxu0 0.0
          %2629 = vmatpush1.msra.mxu0 0.0
          %2630 = vmatprep.subr.mxu0 0.0
          %2631 = vmatpush1.msra.mxu0 0.0
          %2632 = vmatprep.subr.mxu0 0.0
          %2633 = vmatpush1.msra.mxu0 0.0
          %2634 = vmatprep.subr.mxu0 0.0
          %2635 = vmatpush1.msra.mxu0 0.0
          %2636 = vmatprep.subr.mxu0 0.0
          %2637 = vmatpush1.msra.mxu0 0.0
          %2638 = vmatprep.subr.mxu0 0.0
          %2639 = vmatpush1.msra.mxu0 0.0
          %2640 = vmatprep.subr.mxu0 0.0
          %2641 = vmatpush1.msra.mxu0 0.0
          %2642 = vmatprep.subr.mxu0 0.0
          %2643 = vmatpush1.msra.mxu0 0.0
          %2644 = vmatprep.mubr.f32.mxu0 0.0
          %2645 = vmatmul.mubr.f32.gmra.mrb[0].mxu0 %v2483
          %v2646 = vpop.f32.mrb[0].mxu0
          %v2647 = vadd.f32 %v2465, %v2646
          %v2648 = vpop.f32.mrb[0].mxu0
          %v2649 = vadd.f32 %v2465, %v2648
          %2650 = vmatprep.mubr.f32.mxu0 0.0
          %2651 = vmatmul.mubr.f32.gmra.mrb[0].mxu0 %v2485
          %v2652 = vpop.f32.mrb[0].mxu0
          %v2653 = vadd.f32 %v2470, %v2652
          %v2654 = vpop.f32.mrb[0].mxu0
          %v2655 = vadd.f32 %v2470, %v2654
          %2656 = vmatprep.mubr.f32.mxu0 0.0
          %2657 = vmatmul.mubr.f32.gmra.mrb[0].mxu0 %v2487
          %v2658 = vpop.f32.mrb[0].mxu0
          %v2659 = vadd.f32 %v2475, %v2658
          %v2660 = vpop.f32.mrb[0].mxu0
          %v2661 = vadd.f32 %v2475, %v2660
          %2662 = vmatprep.mubr.f32.mxu0 0.0
          %2663 = vmatmul.mubr.f32.gmra.mrb[0].mxu0 %v2489
          %v2664 = vpop.f32.mrb[0].mxu0
          %v2665 = vadd.f32 %v2480, %v2664
          %v2666 = vpop.f32.mrb[0].mxu0
          %v2667 = vadd.f32 %v2480, %v2666
          %2668 = vdwg.mxu0
          %2669 = vmatprep.subr.mxu0 %v2421
          %2670 = vmatpush1.msra.mxu0 %v2420
          %2671 = vmatprep.subr.mxu0 0.0
          %2672 = vmatpush1.msra.mxu0 0.0
          %2673 = vmatprep.subr.mxu0 0.0
          %2674 = vmatpush1.msra.mxu0 0.0
          %2675 = vmatprep.subr.mxu0 0.0
          %2676 = vmatpush1.msra.mxu0 0.0
          %2677 = vmatprep.subr.mxu0 0.0
          %2678 = vmatpush1.msra.mxu0 0.0
          %2679 = vmatprep.subr.mxu0 0.0
          %2680 = vmatpush1.msra.mxu0 0.0
          %2681 = vmatprep.subr.mxu0 0.0
          %2682 = vmatpush1.msra.mxu0 0.0
          %2683 = vmatprep.subr.mxu0 0.0
          %2684 = vmatpush1.msra.mxu0 0.0
          %2685 = vmatprep.subr.mxu0 0.0
          %2686 = vmatpush1.msra.mxu0 0.0
          %2687 = vmatprep.subr.mxu0 0.0
          %2688 = vmatpush1.msra.mxu0 0.0
          %2689 = vmatprep.subr.mxu0 0.0
          %2690 = vmatpush1.msra.mxu0 0.0
          %2691 = vmatprep.subr.mxu0 0.0
          %2692 = vmatpush1.msra.mxu0 0.0
          %2693 = vmatprep.subr.mxu0 0.0
          %2694 = vmatpush1.msra.mxu0 0.0
          %2695 = vmatprep.subr.mxu0 0.0
          %2696 = vmatpush1.msra.mxu0 0.0
          %2697 = vmatprep.subr.mxu0 0.0
          %2698 = vmatpush1.msra.mxu0 0.0
          %2699 = vmatprep.subr.mxu0 0.0
          %2700 = vmatpush1.msra.mxu0 0.0
          %2701 = vmatprep.subr.mxu0 0.0
          %2702 = vmatpush1.msra.mxu0 0.0
          %2703 = vmatprep.subr.mxu0 0.0
          %2704 = vmatpush1.msra.mxu0 0.0
          %2705 = vmatprep.subr.mxu0 0.0
          %2706 = vmatpush1.msra.mxu0 0.0
          %2707 = vmatprep.subr.mxu0 0.0
          %2708 = vmatpush1.msra.mxu0 0.0
          %2709 = vmatprep.subr.mxu0 0.0
          %2710 = vmatpush1.msra.mxu0 0.0
          %2711 = vmatprep.subr.mxu0 0.0
          %2712 = vmatpush1.msra.mxu0 0.0
          %2713 = vmatprep.subr.mxu0 0.0
          %2714 = vmatpush1.msra.mxu0 0.0
          %2715 = vmatprep.subr.mxu0 0.0
          %2716 = vmatpush1.msra.mxu0 0.0
          %2717 = vmatprep.subr.mxu0 0.0
          %2718 = vmatpush1.msra.mxu0 0.0
          %2719 = vmatprep.subr.mxu0 0.0
          %2720 = vmatpush1.msra.mxu0 0.0
          %2721 = vmatprep.subr.mxu0 0.0
          %2722 = vmatpush1.msra.mxu0 0.0
          %2723 = vmatprep.subr.mxu0 0.0
          %2724 = vmatpush1.msra.mxu0 0.0
          %2725 = vmatprep.subr.mxu0 0.0
          %2726 = vmatpush1.msra.mxu0 0.0
          %2727 = vmatprep.subr.mxu0 0.0
          %2728 = vmatpush1.msra.mxu0 0.0
          %2729 = vmatprep.subr.mxu0 0.0
          %2730 = vmatpush1.msra.mxu0 0.0
          %2731 = vmatprep.subr.mxu0 0.0
          %2732 = vmatpush1.msra.mxu0 0.0
          %2733 = vmatprep.mubr.f32.mxu0 0.0
          %2734 = vmatmul.mubr.f32.gmra.mrb[0].mxu0 %v2483
          %v2735 = vpop.f32.mrb[0].mxu0
          %v2736 = vadd.f32 %v2465, %v2735
          %v2737 = vpop.f32.mrb[0].mxu0
          %v2738 = vadd.f32 %v2465, %v2737
          %2739 = vmatprep.mubr.f32.mxu0 0.0
          %2740 = vmatmul.mubr.f32.gmra.mrb[0].mxu0 %v2485
          %v2741 = vpop.f32.mrb[0].mxu0
          %v2742 = vadd.f32 %v2470, %v2741
          %v2743 = vpop.f32.mrb[0].mxu0
          %v2744 = vadd.f32 %v2470, %v2743
          %2745 = vmatprep.mubr.f32.mxu0 0.0
          %2746 = vmatmul.mubr.f32.gmra.mrb[0].mxu0 %v2487
          %v2747 = vpop.f32.mrb[0].mxu0
          %v2748 = vadd.f32 %v2475, %v2747
          %v2749 = vpop.f32.mrb[0].mxu0
          %v2750 = vadd.f32 %v2475, %v2749
          %2751 = vmatprep.mubr.f32.mxu0 0.0
          %2752 = vmatmul.mubr.f32.gmra.mrb[0].mxu0 %v2489
          %v2753 = vpop.f32.mrb[0].mxu0
          %v2754 = vadd.f32 %v2480, %v2753
          %v2755 = vpop.f32.mrb[0].mxu0
          %v2756 = vadd.f32 %v2480, %v2755
          %2757 = vdwg.mxu0
          %2758 = vmatprep.subr.mxu0 %v2423
          %2759 = vmatpush1.msra.mxu0 %v2422
          %2760 = vmatprep.subr.mxu0 0.0
          %2761 = vmatpush1.msra.mxu0 0.0
          %2762 = vmatprep.subr.mxu0 0.0
          %2763 = vmatpush1.msra.mxu0 0.0
          %2764 = vmatprep.subr.mxu0 0.0
          %2765 = vmatpush1.msra.mxu0 0.0
          %2766 = vmatprep.subr.mxu0 0.0
          %2767 = vmatpush1.msra.mxu0 0.0
          %2768 = vmatprep.subr.mxu0 0.0
          %2769 = vmatpush1.msra.mxu0 0.0
          %2770 = vmatprep.subr.mxu0 0.0
          %2771 = vmatpush1.msra.mxu0 0.0
          %2772 = vmatprep.subr.mxu0 0.0
          %2773 = vmatpush1.msra.mxu0 0.0
          %2774 = vmatprep.subr.mxu0 0.0
          %2775 = vmatpush1.msra.mxu0 0.0
          %2776 = vmatprep.subr.mxu0 0.0
          %2777 = vmatpush1.msra.mxu0 0.0
          %2778 = vmatprep.subr.mxu0 0.0
          %2779 = vmatpush1.msra.mxu0 0.0
          %2780 = vmatprep.subr.mxu0 0.0
          %2781 = vmatpush1.msra.mxu0 0.0
          %2782 = vmatprep.subr.mxu0 0.0
          %2783 = vmatpush1.msra.mxu0 0.0
          %2784 = vmatprep.subr.mxu0 0.0
          %2785 = vmatpush1.msra.mxu0 0.0
          %2786 = vmatprep.subr.mxu0 0.0
          %2787 = vmatpush1.msra.mxu0 0.0
          %2788 = vmatprep.subr.mxu0 0.0
          %2789 = vmatpush1.msra.mxu0 0.0
          %2790 = vmatprep.subr.mxu0 0.0
          %2791 = vmatpush1.msra.mxu0 0.0
          %2792 = vmatprep.subr.mxu0 0.0
          %2793 = vmatpush1.msra.mxu0 0.0
          %2794 = vmatprep.subr.mxu0 0.0
          %2795 = vmatpush1.msra.mxu0 0.0
          %2796 = vmatprep.subr.mxu0 0.0
          %2797 = vmatpush1.msra.mxu0 0.0
          %2798 = vmatprep.subr.mxu0 0.0
          %2799 = vmatpush1.msra.mxu0 0.0
          %2800 = vmatprep.subr.mxu0 0.0
          %2801 = vmatpush1.msra.mxu0 0.0
          %2802 = vmatprep.subr.mxu0 0.0
          %2803 = vmatpush1.msra.mxu0 0.0
          %2804 = vmatprep.subr.mxu0 0.0
          %2805 = vmatpush1.msra.mxu0 0.0
          %2806 = vmatprep.subr.mxu0 0.0
          %2807 = vmatpush1.msra.mxu0 0.0
          %2808 = vmatprep.subr.mxu0 0.0
          %2809 = vmatpush1.msra.mxu0 0.0
          %2810 = vmatprep.subr.mxu0 0.0
          %2811 = vmatpush1.msra.mxu0 0.0
          %2812 = vmatprep.subr.mxu0 0.0
          %2813 = vmatpush1.msra.mxu0 0.0
          %2814 = vmatprep.subr.mxu0 0.0
          %2815 = vmatpush1.msra.mxu0 0.0
          %2816 = vmatprep.subr.mxu0 0.0
          %2817 = vmatpush1.msra.mxu0 0.0
          %2818 = vmatprep.subr.mxu0 0.0
          %2819 = vmatpush1.msra.mxu0 0.0
          %2820 = vmatprep.subr.mxu0 0.0
          %2821 = vmatpush1.msra.mxu0 0.0
          %2822 = vmatprep.mubr.f32.mxu0 0.0
          %2823 = vmatmul.mubr.f32.gmra.mrb[0].mxu0 %v2483
          %v2824 = vpop.f32.mrb[0].mxu0
          %v2825 = vadd.f32 %v2465, %v2824
          %v2826 = vpop.f32.mrb[0].mxu0
          %v2827 = vadd.f32 %v2465, %v2826
          %2828 = vmatprep.mubr.f32.mxu0 0.0
          %2829 = vmatmul.mubr.f32.gmra.mrb[0].mxu0 %v2485
          %v2830 = vpop.f32.mrb[0].mxu0
          %v2831 = vadd.f32 %v2470, %v2830
          %v2832 = vpop.f32.mrb[0].mxu0
          %v2833 = vadd.f32 %v2470, %v2832
          %2834 = vmatprep.mubr.f32.mxu0 0.0
          %2835 = vmatmul.mubr.f32.gmra.mrb[0].mxu0 %v2487
          %v2836 = vpop.f32.mrb[0].mxu0
          %v2837 = vadd.f32 %v2475, %v2836
          %v2838 = vpop.f32.mrb[0].mxu0
          %v2839 = vadd.f32 %v2475, %v2838
          %2840 = vmatprep.mubr.f32.mxu0 0.0
          %2841 = vmatmul.mubr.f32.gmra.mrb[0].mxu0 %v2489
          %v2842 = vpop.f32.mrb[0].mxu0
          %v2843 = vadd.f32 %v2480, %v2842
          %v2844 = vpop.f32.mrb[0].mxu0
          %v2845 = vadd.f32 %v2480, %v2844
          %2846 = vdwg.mxu0
          %v2847 = vmax.f32 %v2558, 0.0
          %v2848 = vmax.f32 %v2560, 0.0
          %v2849 = vmax.f32 %v2647, 0.0
          %v2850 = vmax.f32 %v2649, 0.0
          %v2851 = vmax.f32 %v2736, 0.0
          %v2852 = vmax.f32 %v2738, 0.0
          %v2853 = vmax.f32 %v2825, 0.0
          %v2854 = vmax.f32 %v2827, 0.0
          %v2855 = vmax.f32 %v2564, 0.0
          %v2856 = vmax.f32 %v2566, 0.0
          %v2857 = vmax.f32 %v2653, 0.0
          %v2858 = vmax.f32 %v2655, 0.0
          %v2859 = vmax.f32 %v2742, 0.0
          %v2860 = vmax.f32 %v2744, 0.0
          %v2861 = vmax.f32 %v2831, 0.0
          %v2862 = vmax.f32 %v2833, 0.0
          %v2863 = vmax.f32 %v2570, 0.0
          %v2864 = vmax.f32 %v2572, 0.0
          %v2865 = vmax.f32 %v2659, 0.0
          %v2866 = vmax.f32 %v2661, 0.0
          %v2867 = vmax.f32 %v2748, 0.0
          %v2868 = vmax.f32 %v2750, 0.0
          %v2869 = vmax.f32 %v2837, 0.0
          %v2870 = vmax.f32 %v2839, 0.0
          %v2871 = vmax.f32 %v2576, 0.0
          %v2872 = vmax.f32 %v2578, 0.0
          %v2873 = vmax.f32 %v2665, 0.0
          %v2874 = vmax.f32 %v2667, 0.0
          %v2875 = vmax.f32 %v2754, 0.0
          %v2876 = vmax.f32 %v2756, 0.0
          %v2877 = vmax.f32 %v2843, 0.0
          %v2878 = vmax.f32 %v2845, 0.0
          %2879 = vset.pattern.permute.xlu0 9
          %2880 = vperm.xlu0 %2879, %v269
          %v2881 = vpop.permute.xlu0 %2880
          %2883 = vset.pattern.permute.xlu0 9
          %2884 = vperm.xlu0 %2883, %v270
          %v2885 = vpop.permute.xlu0 %2884
          %2887 = vset.pattern.permute.xlu0 9
          %2888 = vperm.xlu0 %2887, %v271
          %v2889 = vpop.permute.xlu0 %2888
          %2891 = vset.pattern.permute.xlu0 9
          %2892 = vperm.xlu0 %2891, %v272
          %v2893 = vpop.permute.xlu0 %2892
          %v2895 = vmul.f32 %v2847, %v2881
          %v2896 = vmul.f32 %v2848, %v2881
          %v2897 = vmul.f32 %v2849, %v2881
          %v2898 = vmul.f32 %v2850, %v2881
          %v2899 = vmul.f32 %v2851, %v2881
          %v2900 = vmul.f32 %v2852, %v2881
          %v2901 = vmul.f32 %v2853, %v2881
          %v2902 = vmul.f32 %v2854, %v2881
          %v2903 = vmul.f32 %v2855, %v2885
          %v2904 = vmul.f32 %v2856, %v2885
          %v2905 = vmul.f32 %v2857, %v2885
          %v2906 = vmul.f32 %v2858, %v2885
          %v2907 = vmul.f32 %v2859, %v2885
          %v2908 = vmul.f32 %v2860, %v2885
          %v2909 = vmul.f32 %v2861, %v2885
          %v2910 = vmul.f32 %v2862, %v2885
          %v2911 = vmul.f32 %v2863, %v2889
          %v2912 = vmul.f32 %v2864, %v2889
          %v2913 = vmul.f32 %v2865, %v2889
          %v2914 = vmul.f32 %v2866, %v2889
          %v2915 = vmul.f32 %v2867, %v2889
          %v2916 = vmul.f32 %v2868, %v2889
          %v2917 = vmul.f32 %v2869, %v2889
          %v2918 = vmul.f32 %v2870, %v2889
          %v2919 = vmul.f32 %v2871, %v2893
          %v2920 = vmul.f32 %v2872, %v2893
          %v2921 = vmul.f32 %v2873, %v2893
          %v2922 = vmul.f32 %v2874, %v2893
          %v2923 = vmul.f32 %v2875, %v2893
          %v2924 = vmul.f32 %v2876, %v2893
          %v2925 = vmul.f32 %v2877, %v2893
          %v2926 = vmul.f32 %v2878, %v2893
          %v2927 = vadd.f32 %v2895, %v2903
          %v2928 = vadd.f32 %v2927, %v2911
          %v2929 = vadd.f32 %v2928, %v2919
          %v2930 = vrot.slane %v2929, 4
          %v2931 = vadd.f32 %v2929, %v2930
          %v2932 = vrot.slane %v2931, 2
          %v2933 = vadd.f32 %v2931, %v2932
          %v2934 = vrot.slane %v2933, 1
          %v2935 = vadd.f32 %v2933, %v2934
          %v2936 = vadd.f32 %v2896, %v2904
          %v2937 = vadd.f32 %v2936, %v2912
          %v2938 = vadd.f32 %v2937, %v2920
          %v2939 = vrot.slane %v2938, 4
          %v2940 = vadd.f32 %v2938, %v2939
          %v2941 = vrot.slane %v2940, 2
          %v2942 = vadd.f32 %v2940, %v2941
          %v2943 = vrot.slane %v2942, 1
          %v2944 = vadd.f32 %v2942, %v2943
          %v2945 = vadd.f32 %v2897, %v2905
          %v2946 = vadd.f32 %v2945, %v2913
          %v2947 = vadd.f32 %v2946, %v2921
          %v2948 = vrot.slane %v2947, 4
          %v2949 = vadd.f32 %v2947, %v2948
          %v2950 = vrot.slane %v2949, 2
          %v2951 = vadd.f32 %v2949, %v2950
          %v2952 = vrot.slane %v2951, 1
          %v2953 = vadd.f32 %v2951, %v2952
          %v2954 = vadd.f32 %v2898, %v2906
          %v2955 = vadd.f32 %v2954, %v2914
          %v2956 = vadd.f32 %v2955, %v2922
          %v2957 = vrot.slane %v2956, 4
          %v2958 = vadd.f32 %v2956, %v2957
          %v2959 = vrot.slane %v2958, 2
          %v2960 = vadd.f32 %v2958, %v2959
          %v2961 = vrot.slane %v2960, 1
          %v2962 = vadd.f32 %v2960, %v2961
          %v2963 = vadd.f32 %v2899, %v2907
          %v2964 = vadd.f32 %v2963, %v2915
          %v2965 = vadd.f32 %v2964, %v2923
          %v2966 = vrot.slane %v2965, 4
          %v2967 = vadd.f32 %v2965, %v2966
          %v2968 = vrot.slane %v2967, 2
          %v2969 = vadd.f32 %v2967, %v2968
          %v2970 = vrot.slane %v2969, 1
          %v2971 = vadd.f32 %v2969, %v2970
          %v2972 = vadd.f32 %v2900, %v2908
          %v2973 = vadd.f32 %v2972, %v2916
          %v2974 = vadd.f32 %v2973, %v2924
          %v2975 = vrot.slane %v2974, 4
          %v2976 = vadd.f32 %v2974, %v2975
          %v2977 = vrot.slane %v2976, 2
          %v2978 = vadd.f32 %v2976, %v2977
          %v2979 = vrot.slane %v2978, 1
          %v2980 = vadd.f32 %v2978, %v2979
          %v2981 = vadd.f32 %v2901, %v2909
          %v2982 = vadd.f32 %v2981, %v2917
          %v2983 = vadd.f32 %v2982, %v2925
          %v2984 = vrot.slane %v2983, 4
          %v2985 = vadd.f32 %v2983, %v2984
          %v2986 = vrot.slane %v2985, 2
          %v2987 = vadd.f32 %v2985, %v2986
          %v2988 = vrot.slane %v2987, 1
          %v2989 = vadd.f32 %v2987, %v2988
          %v2990 = vadd.f32 %v2902, %v2910
          %v2991 = vadd.f32 %v2990, %v2918
          %v2992 = vadd.f32 %v2991, %v2926
          %v2993 = vrot.slane %v2992, 4
          %v2994 = vadd.f32 %v2992, %v2993
          %v2995 = vrot.slane %v2994, 2
          %v2996 = vadd.f32 %v2994, %v2995
          %v2997 = vrot.slane %v2996, 1
          %v2998 = vadd.f32 %v2996, %v2997
          %3000 = vset.pattern.permute.xlu0 10
          %3001 = vperm.xlu0 %3000, %v273
          %v3002 = vpop.permute.xlu0 %3001
          %v3004 = vadd.f32 %v2935, %v3002
          %v3005 = vadd.f32 %v2944, %v3002
          %v3006 = vadd.f32 %v2953, %v3002
          %v3007 = vadd.f32 %v2962, %v3002
          %v3008 = vadd.f32 %v2971, %v3002
          %v3009 = vadd.f32 %v2980, %v3002
          %v3010 = vadd.f32 %v2989, %v3002
          %v3011 = vadd.f32 %v2998, %v3002
          %v3020 = vcombine.low %v3004, %v3005
          %v3021 = vcombine.low %v3006, %v3007
          %v3022 = vcombine.low %v3008, %v3009
          %v3023 = vcombine.low %v3010, %v3011
          %v3025 = vunpack.c.l.s4 1966171168
          %v3026 = vunpack.c.0.s8 %v3025
          %v3027 = vlaneseq
          %v3028 = vshrl.u32 %v3027, 7
          %v3029 = vsub.s32 %v3026, %v3028
          %v3030 = vrot.slane %v3020, %v3029
          %v3032 = vunpack.c.l.s4 1966171168
          %v3033 = vunpack.c.0.s8 %v3032
          %v3034 = vlaneseq
          %v3035 = vshrl.u32 %v3034, 7
          %v3036 = vsub.s32 %v3033, %v3035
          %v3037 = vrot.slane %v3021, %v3036
          %v3039 = vunpack.c.l.s4 1966171168
          %v3040 = vunpack.c.0.s8 %v3039
          %v3041 = vlaneseq
          %v3042 = vshrl.u32 %v3041, 7
          %v3043 = vsub.s32 %v3040, %v3042
          %v3044 = vrot.slane %v3022, %v3043
          %v3046 = vunpack.c.l.s4 1966171168
          %v3047 = vunpack.c.0.s8 %v3046
          %v3048 = vlaneseq
          %v3049 = vshrl.u32 %v3048, 7
          %v3050 = vsub.s32 %v3047, %v3049
          %v3051 = vrot.slane %v3023, %v3050
          %v3052 = vcombine.low %v3030, %v3037
          %v3053 = vcombine.low %v3044, %v3051
          %v3055 = vunpack.c.l.s4 1966171168
          %v3056 = vunpack.c.0.s8 %v3055
          %v3057 = vlaneseq
          %v3058 = vshrl.u32 %v3057, 7
          %v3059 = vsub.s32 %v3056, %v3058
          %v3060 = vrot.slane %v3052, %v3059
          %v3062 = vunpack.c.l.s4 1966171168
          %v3063 = vunpack.c.0.s8 %v3062
          %v3064 = vlaneseq
          %v3065 = vshrl.u32 %v3064, 7
          %v3066 = vsub.s32 %v3063, %v3065
          %v3067 = vrot.slane %v3053, %v3066
          %v3068 = vcombine.low %v3060, %v3067
          %s3070 = scalar_lea.vmem %s264, %s281 [#allocation8]
          %3071 = vst [vmem:[%s3070] sm:$0xff] %v3068
        $region45: #{lotd_forest_sdf_forward.1} parent=31 // loop_footer
          %s279 = sadd.s32 1, %s275
        $region46: #{lotd_forest_sdf_forward.1} parent=31 // loop_footer_branch
          %274 = sbr.rel target = $region42
        $region47: #{lotd_forest_sdf_forward.1} parent=31 // loop_exit
          _
        %s3072 = sand.u32 %s109, 1
        %s3073 = scalar_lea.sflag [#allocation4], %s3072
        %s3074 = sand.u32 %s109, 1
        %s3075 = smul.addr %s3074, 256
        %s3076 = scalar_lea.vmem [#allocation7], %s3075
        %s3077 = sand.u32 %s135, 1
        %s3078 = scalar_lea.sflag [#allocation9], %s3077
        %s3079 = sand.u32 %s135, 1
        %s3080 = smul.addr %s3079, 64
        %s3081 = scalar_lea.vmem [#allocation8], %s3080
        // Predicated region
        $region48: #{lotd_forest_sdf_forward.1} parent=31 // pred_check
          %p3082 = pneg %p119
        $region49: #{lotd_forest_sdf_forward.1} parent=31 // pred_check_branch
          %3084 = sbr.rel (%p3082) target = $region51
        $region50: #{lotd_forest_sdf_forward.1} parent=31 // pred_region
          %s3085 = smul.u32 64, %s28
          %s3087 = ssub.s32 4096, 4096
          %3088 = vsyncadd %s3073, %s3087
          %s3089 = smul.addr %s3085, 64
          %s3090 = scalar_lea.hbm %s3, %s3089
          %s3092 = sshll.u32 %s3076, 4
          %s3093 = int_to_ptr.vmem [resolvable:$true] %s3092
          %3095 = dma.vmem_to_hbm [thread:$0]  %s3093, 4096, %s3090, %s3073
        $region51: #{lotd_forest_sdf_forward.1} parent=31 // pred_fallthru
          _
        // Predicated region
        $region52: #{lotd_forest_sdf_forward.1} parent=31 // pred_check
          %p3096 = pneg %p145
        $region53: #{lotd_forest_sdf_forward.1} parent=31 // pred_check_branch
          %3098 = sbr.rel (%p3096) target = $region55
        $region54: #{lotd_forest_sdf_forward.1} parent=31 // pred_region
          %s3099 = smul.u32 64, %s28
          %s3101 = ssub.s32 1024, 1024
          %3102 = vsyncadd %s3078, %s3101
          %s3103 = smul.addr %s3099, 16
          %s3104 = scalar_lea.hbm %s4, %s3103
          %s3106 = sshll.u32 %s3081, 4
          %s3107 = int_to_ptr.vmem [resolvable:$true] %s3106
          %3109 = dma.vmem_to_hbm [thread:$0]  %s3107, 1024, %s3104, %s3078
        $region55: #{lotd_forest_sdf_forward.1} parent=31 // pred_fallthru
          _
      $region32: #{lotd_forest_sdf_forward.1} parent=5 // pred_fallthru
        _
      %p3110 = scmp.le.s32.totalorder 2, %s23
      // Predicated region
      $region56: #{lotd_forest_sdf_forward.1} parent=5 // pred_check
        %p3111 = pneg %p3110
      $region57: #{lotd_forest_sdf_forward.1} parent=5 // pred_check_branch
        %3113 = sbr.rel (%p3111) target = $region59
      $region58: #{lotd_forest_sdf_forward.1} parent=5 // pred_region
        %s3114 = ssub.s32 %s23, 2
        // Predicated region
        $region60: #{lotd_forest_sdf_forward.1} parent=58 // pred_check
          %p3115 = pneg %p125
        $region61: #{lotd_forest_sdf_forward.1} parent=58 // pred_check_branch
          %3117 = sbr.rel (%p3115) target = $region63
        $region62: #{lotd_forest_sdf_forward.1} parent=58 // pred_region
          %s3118 = sand.u32 %s110, 1
          %s3119 = scalar_lea.sflag [#allocation4], %s3118
          %s3120 = sand.u32 %s110, 1
          %s3121 = smul.addr %s3120, 256
          %s3122 = scalar_lea.vmem [#allocation7], %s3121
          %3123 = dma.done %s3119, 4096
        $region63: #{lotd_forest_sdf_forward.1} parent=58 // pred_fallthru
          _
        // Predicated region
        $region64: #{lotd_forest_sdf_forward.1} parent=58 // pred_check
          %p3124 = pneg %p151
        $region65: #{lotd_forest_sdf_forward.1} parent=58 // pred_check_branch
          %3126 = sbr.rel (%p3124) target = $region67
        $region66: #{lotd_forest_sdf_forward.1} parent=58 // pred_region
          %s3127 = sand.u32 %s136, 1
          %s3128 = scalar_lea.sflag [#allocation9], %s3127
          %s3129 = sand.u32 %s136, 1
          %s3130 = smul.addr %s3129, 64
          %s3131 = scalar_lea.vmem [#allocation8], %s3130
          %3132 = dma.done %s3128, 1024
        $region67: #{lotd_forest_sdf_forward.1} parent=58 // pred_fallthru
          _
      $region59: #{lotd_forest_sdf_forward.1} parent=5 // pred_fallthru
        _
    $region6: #{lotd_forest_sdf_forward.1} parent=1 // loop_footer
      %s27 = sadd.s32 1, %s23
    $region7: #{lotd_forest_sdf_forward.1} parent=1 // loop_footer_branch
      %22 = sbr.rel target = $region3
    $region8: #{lotd_forest_sdf_forward.1} parent=1 // loop_exit
      _
    %3133 = vsyncpa [#allocation3], 1
    %s3134 = scalar_lea.sflag [#allocation3], 1
    %3135 = vsyncpa %s3134, 1
    %3136 = vsyncpa [#allocation6], 1
    %s3137 = scalar_lea.sflag [#allocation6], 1
    %3138 = vsyncpa %s3137, 1
    %3139 = vsyncpa [#allocation4], 1
    %s3140 = scalar_lea.sflag [#allocation4], 1
    %3141 = vsyncpa %s3140, 1
    %3142 = vsyncpa [#allocation9], 1
    %s3143 = scalar_lea.sflag [#allocation9], 1
    %3144 = vsyncpa %s3143, 1

</llo_original>
